<compile_context>
chip_gen: v7x
topology: tpu7x:2x2x1
jax: 0.10.0
libtpu: 0.0.40
codegen_flags: <defaults>
</compile_context>

<pallas_src>
import functools

import jax
import jax.numpy as jnp
from jax import lax
from jax.experimental import pallas as pl
from jax.experimental.pallas import tpu as pltpu


def _round_up(x, m):
    return ((x + m - 1) // m) * m


def _lstm_kernel(emb_ref, wih_ref, whh_ref, b_ref, h0_ref, c0_ref,
                 out_ref, hN_ref, cN_ref, h_sc, c_sc):
    """One (batch_block, time_chunk) grid step of the LSTM.

    emb_ref : (T, BB, E)    bf16 time-major embedded inputs for this chunk
    wih_ref : (E, 4Hp)      bf16 input->gates weight (gate-blocked, padded)
    whh_ref : (Hp, 4Hp)     bf16 hidden->gates weight (gate-blocked, padded)
    b_ref   : (1, 4Hp)      f32  b_ih + b_hh (gate-blocked, padded)
    h0_ref  : (BB, Hp)      f32  initial hidden for this batch block
    c0_ref  : (BB, Hp)      f32  initial cell   for this batch block
    out_ref : (BB, T, Hp)   f32  hidden states, written batch-first
    hN_ref  : (BB, Hp)      f32  final hidden (written on last time chunk)
    cN_ref  : (BB, Hp)      f32  final cell   (written on last time chunk)
    h_sc/c_sc : VMEM scratch carrying the recurrent state across time chunks
    """
    T, BB, E = emb_ref.shape
    Hp = h_sc.shape[-1]
    t_id = pl.program_id(1)

    @pl.when(t_id == 0)
    def _():
        h_sc[...] = h0_ref[...]
        c_sc[...] = c0_ref[...]

    # ---- hoisted input projection: one big MXU matmul per chunk -------------
    # (T, BB, E) -> (T*BB, E) only merges leading dims (BB is a sublane
    # multiple), so the reshape is layout-free.
    x = emb_ref[...].reshape(T * BB, E)
    gx = jnp.dot(x, wih_ref[...], preferred_element_type=jnp.float32)
    gx = gx + b_ref[...]                       # (T*BB, 4Hp), bias folded once

    whh = whh_ref[...]                         # bf16, resident in vregs

    # Recurrent state lives in vregs inside the chunk; scratch only at edges.
    h = h_sc[...]
    c = c_sc[...]

    # Static unroll over the chunk: gives the scheduler visibility to overlap
    # the MXU result pop of step s+1 with the EUP/VPU gate math of step s and
    # the (BB, Hp) output store of step s-1.
    for s in range(T):
        # Per-step gate slab: static, lane-aligned (BB, 4Hp) rows of gx.
        gates = gx[s * BB:(s + 1) * BB, :] + jnp.dot(
            h.astype(whh.dtype), whh, preferred_element_type=jnp.float32)
        # PyTorch gate order: i, f, g, o (each a lane-aligned Hp block).
        i = jax.nn.sigmoid(gates[:, 0 * Hp:1 * Hp])
        f = jax.nn.sigmoid(gates[:, 1 * Hp:2 * Hp])
        g = jnp.tanh(gates[:, 2 * Hp:3 * Hp])
        o = jax.nn.sigmoid(gates[:, 3 * Hp:4 * Hp])
        c = f * c + i * g
        h = o * jnp.tanh(c)
        # (BB, Hp) row into the resident batch-first chunk tile; the HBM
        # writeback is one chunked (BB, T, Hp) DMA per grid step.
        out_ref[:, s, :] = h

    h_sc[...] = h
    c_sc[...] = c

    @pl.when(t_id == pl.num_programs(1) - 1)
    def _():
        hN_ref[...] = h
        cN_ref[...] = c


@functools.partial(jax.jit, static_argnames=("time_chunk",))
def encoder_forward(inputs, prev_hidden, prev_cell, params, *, time_chunk=8):
    """Mirrors Encoder.forward (eval mode).

    inputs      : (B, S) int32 token ids
    prev_hidden : (1, B, H) float32
    prev_cell   : (1, B, H) float32
    returns (output (B, S, H), hidden (1, B, H), cell (1, B, H))
    """
    emb_table = params["embedding"]          # (V, E) f32, row 0 == 0 (padding_idx)
    w_ih_t = params["w_ih_t"]                # (E, 4H) f32
    w_hh_t = params["w_hh_t"]                # (H, 4H) f32
    bias = params["bias"]                    # (4H,)  f32  (b_ih + b_hh)

    B, S = inputs.shape
    E = emb_table.shape[1]
    H = prev_hidden.shape[-1]

    # ---- padding to TPU-friendly shapes -------------------------------------
    Bp = _round_up(max(B, 8), 8)             # sublane multiple
    Hp = _round_up(H, 128)                   # lane multiple
    pad_h = Hp - H

    # Time chunking (pipelined grid axis). Fall back to a single chunk if the
    # requested chunk does not evenly tile S.
    if time_chunk % 8 == 0 and S % time_chunk == 0:
        T = time_chunk
    else:
        T = S
    num_chunks = S // T

    # Batch blocking: two blocks when possible so the "parallel" batch axis can
    # be split across v7x's two TensorCores.
    BB = Bp // 2 if Bp % 16 == 0 else Bp
    num_bblocks = Bp // BB

    # ---- pad / re-block the weights (gate order i,f,g,o kept per Hp block) --
    w_ih_p = jnp.pad(w_ih_t.reshape(E, 4, H), ((0, 0), (0, 0), (0, pad_h)))
    w_ih_p = w_ih_p.reshape(E, 4 * Hp).astype(jnp.bfloat16)
    w_hh_p = jnp.pad(w_hh_t.reshape(H, 4, H), ((0, pad_h), (0, 0), (0, pad_h)))
    w_hh_p = w_hh_p.reshape(Hp, 4 * Hp).astype(jnp.bfloat16)
    bias_p = jnp.pad(bias.reshape(4, H), ((0, 0), (0, pad_h)))
    bias_p = bias_p.reshape(1, 4 * Hp).astype(jnp.float32)

    # ---- activations ---------------------------------------------------------
    ids = jnp.pad(inputs, ((0, Bp - B), (0, 0)))             # (Bp, S), pad tok 0
    # Gather straight into time-major layout from a bf16 table: only the tiny
    # int32 id matrix is transposed and the gathered tensor is already in the
    # matmul dtype (half the HBM traffic of an f32 gather + cast).
    embedded_tm = jnp.take(emb_table.astype(jnp.bfloat16), ids.T, axis=0)  # (S,Bp,E)

    h0 = jnp.pad(prev_hidden[0], ((0, Bp - B), (0, pad_h)))  # (Bp, Hp)
    c0 = jnp.pad(prev_cell[0], ((0, Bp - B), (0, pad_h)))    # (Bp, Hp)

    grid_spec = pltpu.PrefetchScalarGridSpec(
        num_scalar_prefetch=0,
        grid=(num_bblocks, num_chunks),
        in_specs=[
            pl.BlockSpec((T, BB, E), lambda b, t: (t, b, 0)),       # embedded
            pl.BlockSpec((E, 4 * Hp), lambda b, t: (0, 0)),         # W_ih
            pl.BlockSpec((Hp, 4 * Hp), lambda b, t: (0, 0)),        # W_hh
            pl.BlockSpec((1, 4 * Hp), lambda b, t: (0, 0)),         # bias
            pl.BlockSpec((BB, Hp), lambda b, t: (b, 0)),            # h0
            pl.BlockSpec((BB, Hp), lambda b, t: (b, 0)),            # c0
        ],
        out_specs=[
            pl.BlockSpec((BB, T, Hp), lambda b, t: (b, t, 0)),      # output (B,S,H)
            pl.BlockSpec((BB, Hp), lambda b, t: (b, 0)),            # h_N
            pl.BlockSpec((BB, Hp), lambda b, t: (b, 0)),            # c_N
        ],
        scratch_shapes=[
            pltpu.VMEM((BB, Hp), jnp.float32),   # h carry
            pltpu.VMEM((BB, Hp), jnp.float32),   # c carry
        ],
    )

    out_p, h_n, c_n = pl.pallas_call(
        _lstm_kernel,
        out_shape=(
            jax.ShapeDtypeStruct((Bp, S, Hp), jnp.float32),
            jax.ShapeDtypeStruct((Bp, Hp), jnp.float32),
            jax.ShapeDtypeStruct((Bp, Hp), jnp.float32),
        ),
        grid_spec=grid_spec,
        compiler_params=pltpu.CompilerParams(
            # batch blocks are independent -> parallel (2 TCs on v7x);
            # time chunks carry the recurrence -> arbitrary.
            dimension_semantics=("parallel", "arbitrary")),
    )(embedded_tm, w_ih_p, w_hh_p, bias_p, h0, c0)

    output = out_p[:B, :, :H]
    hidden = h_n[:B, :H][None, :, :]
    cell = c_n[:B, :H][None, :, :]
    # Dropout: eval-mode identity.
    return output, hidden, cell


def _reference_forward(inputs, prev_hidden, prev_cell, params):
    """Pure-JAX f32 reference of Embedding + LSTM (PyTorch semantics)."""
    emb_table = params["embedding"]
    w_ih_t = params["w_ih_t"]
    w_hh_t = params["w_hh_t"]
    bias = params["bias"]
    H = prev_hidden.shape[-1]

    embedded = jnp.take(emb_table, inputs, axis=0)          # (B, S, E)

    def step(carry, x_t):
        h, c = carry
        gates = x_t @ w_ih_t + h @ w_hh_t + bias
        i = jax.nn.sigmoid(gates[:, 0 * H:1 * H])
        f = jax.nn.sigmoid(gates[:, 1 * H:2 * H])
        g = jnp.tanh(gates[:, 2 * H:3 * H])
        o = jax.nn.sigmoid(gates[:, 3 * H:4 * H])
        c_new = f * c + i * g
        h_new = o * jnp.tanh(c_new)
        return (h_new, c_new), h_new

    (h_n, c_n), out_tm = lax.scan(
        step, (prev_hidden[0], prev_cell[0]),
        jnp.transpose(embedded, (1, 0, 2)))
    return jnp.transpose(out_tm, (1, 0, 2)), h_n[None], c_n[None]


def init_params(key, vocab, emb_dim, hidn_dim):
    k_emb, k_wih, k_whh, k_bih, k_bhh = jax.random.split(key, 5)
    bound = 1.0 / jnp.sqrt(hidn_dim)

    emb = jax.random.normal(k_emb, (vocab, emb_dim), jnp.float32)
    emb = emb.at[0].set(0.0)                                 # padding_idx=0

    w_ih = jax.random.uniform(k_wih, (4 * hidn_dim, emb_dim), jnp.float32,
                              -bound, bound)
    w_hh = jax.random.uniform(k_whh, (4 * hidn_dim, hidn_dim), jnp.float32,
                              -bound, bound)
    b_ih = jax.random.uniform(k_bih, (4 * hidn_dim,), jnp.float32, -bound, bound)
    b_hh = jax.random.uniform(k_bhh, (4 * hidn_dim,), jnp.float32, -bound, bound)

    return {
        "embedding": emb,
        "w_ih_t": jnp.transpose(w_ih),                       # (E, 4H)
        "w_hh_t": jnp.transpose(w_hh),                       # (H, 4H)
        "bias": b_ih + b_hh,                                 # (4H,)
    }


if __name__ == "__main__":
    VOCAB, EMB, HID = 10, 16, 32
    B, S = 2, 16   # S=16 with time_chunk=8 -> two pipelined time chunks

    key = jax.random.PRNGKey(0)
    k_par, k_in, k_h, k_c = jax.random.split(key, 4)

    params = init_params(k_par, VOCAB, EMB, HID)
    inputs = jax.random.randint(k_in, (B, S), 0, VOCAB, jnp.int32)
    prev_hidden = jax.random.normal(k_h, (1, B, HID), jnp.float32)
    prev_cell = jax.random.normal(k_c, (1, B, HID), jnp.float32)

    out, h_n, c_n = encoder_forward(inputs, prev_hidden, prev_cell, params)
    jax.block_until_ready((out, h_n, c_n))

    ref_out, ref_h, ref_c = _reference_forward(inputs, prev_hidden, prev_cell,
                                               params)
    assert out.shape == (B, S, HID)
    assert h_n.shape == (1, B, HID) and c_n.shape == (1, B, HID)
    # bf16 matmuls inside the kernel vs. the pure-f32 reference -> relaxed tol.
    assert jnp.allclose(out, ref_out, atol=5e-2, rtol=5e-2), "output mismatch"
    assert jnp.allclose(h_n, ref_h, atol=5e-2, rtol=5e-2), "hidden mismatch"
    assert jnp.allclose(c_n, ref_c, atol=5e-2, rtol=5e-2), "cell mismatch"

    print("KERNEL_OK")
</pallas_src>

<mosaic_0001>
module attributes {stable_mosaic.version = 11 : i64} {
  func.func @_lstm_kernel(%arg0: i32, %arg1: i32, %arg2: memref<8x8x16xbf16, #tpu.memory_space<vmem>>, %arg3: memref<16x512xbf16, #tpu.memory_space<vmem>>, %arg4: memref<128x512xbf16, #tpu.memory_space<vmem>>, %arg5: memref<1x512xf32, #tpu.memory_space<vmem>>, %arg6: memref<8x128xf32, #tpu.memory_space<vmem>>, %arg7: memref<8x128xf32, #tpu.memory_space<vmem>>, %arg8: memref<8x8x128xf32, #tpu.memory_space<vmem>>, %arg9: memref<8x128xf32, #tpu.memory_space<vmem>>, %arg10: memref<8x128xf32, #tpu.memory_space<vmem>>, %arg11: memref<8x128xf32, #tpu.memory_space<vmem>>, %arg12: memref<8x128xf32, #tpu.memory_space<vmem>>) attributes {dimension_semantics = [#tpu.dimension_semantics<parallel>, #tpu.dimension_semantics<arbitrary>], iteration_bounds = array<i64: 1, 2>, scalar_prefetch = 0 : i64, scratch_operands = 2 : i64, tpu.core_type = #tpu.core_type<tc>, window_params = [{transform_indices = @transform_0, window_bounds = array<i64: 8, 8, 16>}, {pipeline_mode = #tpu.pipeline_mode<synchronous>, transform_indices = @transform_1, window_bounds = array<i64: 16, 512>}, {pipeline_mode = #tpu.pipeline_mode<synchronous>, transform_indices = @transform_2, window_bounds = array<i64: 128, 512>}, {pipeline_mode = #tpu.pipeline_mode<synchronous>, transform_indices = @transform_3, window_bounds = array<i64: 1, 512>}, {transform_indices = @transform_4, window_bounds = array<i64: 8, 128>}, {transform_indices = @transform_5, window_bounds = array<i64: 8, 128>}, {transform_indices = @transform_6, window_bounds = array<i64: 8, 8, 128>}, {transform_indices = @transform_7, window_bounds = array<i64: 8, 128>}, {transform_indices = @transform_8, window_bounds = array<i64: 8, 128>}]} {
    %c0_i32 = arith.constant 0 : i32
    %0 = arith.cmpi eq, %arg1, %c0_i32 : i32
    %1 = arith.extui %0 : i1 to i32
    %c0_i32_0 = arith.constant 0 : i32
    %2 = arith.cmpi ne, %1, %c0_i32_0 : i32
    scf.if %2 {
      %c0_67 = arith.constant 0 : index
      %c0_68 = arith.constant 0 : index
      %274 = vector.load %arg6[%c0_67, %c0_68] : memref<8x128xf32, #tpu.memory_space<vmem>>, vector<8x128xf32>
      %c0_69 = arith.constant 0 : index
      %c0_70 = arith.constant 0 : index
      %275 = vector.load %arg11[%c0_69, %c0_70] : memref<8x128xf32, #tpu.memory_space<vmem>>, vector<8x128xf32>
      tpu.vector_store %arg11[%c0_69, %c0_70], %274 {strides = array<i32>} : memref<8x128xf32, #tpu.memory_space<vmem>>, vector<8x128xf32>,
      %c0_71 = arith.constant 0 : index
      %c0_72 = arith.constant 0 : index
      %276 = vector.load %arg7[%c0_71, %c0_72] : memref<8x128xf32, #tpu.memory_space<vmem>>, vector<8x128xf32>
      %c0_73 = arith.constant 0 : index
      %c0_74 = arith.constant 0 : index
      %277 = vector.load %arg12[%c0_73, %c0_74] : memref<8x128xf32, #tpu.memory_space<vmem>>, vector<8x128xf32>
      tpu.vector_store %arg12[%c0_73, %c0_74], %276 {strides = array<i32>} : memref<8x128xf32, #tpu.memory_space<vmem>>, vector<8x128xf32>,
    } else {
    }
    %c0 = arith.constant 0 : index
    %c0_1 = arith.constant 0 : index
    %c0_2 = arith.constant 0 : index
    %3 = vector.load %arg2[%c0, %c0_1, %c0_2] : memref<8x8x16xbf16, #tpu.memory_space<vmem>>, vector<8x8x16xbf16>
    %4 = vector.shape_cast %3 : vector<8x8x16xbf16> to vector<64x16xbf16>
    %c0_3 = arith.constant 0 : index
    %c0_4 = arith.constant 0 : index
    %5 = vector.load %arg3[%c0_3, %c0_4] : memref<16x512xbf16, #tpu.memory_space<vmem>>, vector<16x512xbf16>
    %cst = arith.constant dense<0.000000e+00> : vector<64x512xf32>
    %6 = tpu.matmul %4, %5, %cst {dimension_numbers = #tpu.dot_dimension_numbers<[1], [0], [0], [1], [0, 0, 1, 1], [], []>} : vector<64x16xbf16>, vector<16x512xbf16>, vector<64x512xf32> -> vector<64x512xf32>
    %c0_5 = arith.constant 0 : index
    %c0_6 = arith.constant 0 : index
    %7 = vector.load %arg5[%c0_5, %c0_6] : memref<1x512xf32, #tpu.memory_space<vmem>>, vector<1x512xf32>
    %8 = vector.broadcast %7 : vector<1x512xf32> to vector<64x512xf32>
    %9 = arith.addf %6, %8 : vector<64x512xf32>
    %c0_7 = arith.constant 0 : index
    %c0_8 = arith.constant 0 : index
    %10 = vector.load %arg4[%c0_7, %c0_8] : memref<128x512xbf16, #tpu.memory_space<vmem>>, vector<128x512xbf16>
    %c0_9 = arith.constant 0 : index
    %c0_10 = arith.constant 0 : index
    %11 = vector.load %arg11[%c0_9, %c0_10] : memref<8x128xf32, #tpu.memory_space<vmem>>, vector<8x128xf32>
    %c0_11 = arith.constant 0 : index
    %c0_12 = arith.constant 0 : index
    %12 = vector.load %arg12[%c0_11, %c0_12] : memref<8x128xf32, #tpu.memory_space<vmem>>, vector<8x128xf32>
    %13 = vector.extract_strided_slice %9 {offsets = [0, 0], sizes = [8, 512], strides = [1, 1]} : vector<64x512xf32> to vector<8x512xf32>
    %14 = arith.truncf %11 : vector<8x128xf32> to vector<8x128xbf16>
    %cst_13 = arith.constant dense<0.000000e+00> : vector<8x512xf32>
    %15 = tpu.matmul %14, %10, %cst_13 {dimension_numbers = #tpu.dot_dimension_numbers<[1], [0], [0], [1], [0, 0, 1, 1], [], []>} : vector<8x128xbf16>, vector<128x512xbf16>, vector<8x512xf32> -> vector<8x512xf32>
    %16 = arith.addf %13, %15 : vector<8x512xf32>
    %17 = vector.extract_strided_slice %16 {offsets = [0, 0], sizes = [8, 128], strides = [1, 1]} : vector<8x512xf32> to vector<8x128xf32>
    %18 = arith.negf %17 : vector<8x128xf32>
    %19 = math.exp %18 : vector<8x128xf32>
    %cst_14 = arith.constant 1.000000e+00 : f32
    %20 = vector.broadcast %cst_14 : f32 to vector<8x128xf32>
    %21 = arith.addf %20, %19 : vector<8x128xf32>
    %22 = arith.divf %20, %21 : vector<8x128xf32>
    %23 = vector.extract_strided_slice %16 {offsets = [0, 128], sizes = [8, 128], strides = [1, 1]} : vector<8x512xf32> to vector<8x128xf32>
    %24 = arith.negf %23 : vector<8x128xf32>
    %25 = math.exp %24 : vector<8x128xf32>
    %cst_15 = arith.constant 1.000000e+00 : f32
    %26 = vector.broadcast %cst_15 : f32 to vector<8x128xf32>
    %27 = arith.addf %26, %25 : vector<8x128xf32>
    %28 = arith.divf %26, %27 : vector<8x128xf32>
    %29 = vector.extract_strided_slice %16 {offsets = [0, 256], sizes = [8, 128], strides = [1, 1]} : vector<8x512xf32> to vector<8x128xf32>
    %30 = math.tanh %29 : vector<8x128xf32>
    %31 = vector.extract_strided_slice %16 {offsets = [0, 384], sizes = [8, 128], strides = [1, 1]} : vector<8x512xf32> to vector<8x128xf32>
    %32 = arith.negf %31 : vector<8x128xf32>
    %33 = math.exp %32 : vector<8x128xf32>
    %cst_16 = arith.constant 1.000000e+00 : f32
    %34 = vector.broadcast %cst_16 : f32 to vector<8x128xf32>
    %35 = arith.addf %34, %33 : vector<8x128xf32>
    %36 = arith.divf %34, %35 : vector<8x128xf32>
    %37 = arith.mulf %28, %12 : vector<8x128xf32>
    %38 = arith.mulf %22, %30 : vector<8x128xf32>
    %39 = arith.addf %37, %38 : vector<8x128xf32>
    %40 = math.tanh %39 : vector<8x128xf32>
    %41 = arith.mulf %36, %40 : vector<8x128xf32>
    %c0_17 = arith.constant 0 : index
    %c0_18 = arith.constant 0 : index
    %c0_19 = arith.constant 0 : index
    %42 = vector.load %arg8[%c0_17, %c0_18, %c0_19] : memref<8x8x128xf32, #tpu.memory_space<vmem>>, vector<8x1x128xf32>
    %43 = vector.shape_cast %42 : vector<8x1x128xf32> to vector<8x128xf32>
    %44 = vector.shape_cast %41 : vector<8x128xf32> to vector<8x1x128xf32>
    tpu.vector_store %arg8[%c0_17, %c0_18, %c0_19], %44 {strides = array<i32>} : memref<8x8x128xf32, #tpu.memory_space<vmem>>, vector<8x1x128xf32>,
    %45 = vector.extract_strided_slice %9 {offsets = [8, 0], sizes = [8, 512], strides = [1, 1]} : vector<64x512xf32> to vector<8x512xf32>
    %46 = arith.truncf %41 : vector<8x128xf32> to vector<8x128xbf16>
    %cst_20 = arith.constant dense<0.000000e+00> : vector<8x512xf32>
    %47 = tpu.matmul %46, %10, %cst_20 {dimension_numbers = #tpu.dot_dimension_numbers<[1], [0], [0], [1], [0, 0, 1, 1], [], []>} : vector<8x128xbf16>, vector<128x512xbf16>, vector<8x512xf32> -> vector<8x512xf32>
    %48 = arith.addf %45, %47 : vector<8x512xf32>
    %49 = vector.extract_strided_slice %48 {offsets = [0, 0], sizes = [8, 128], strides = [1, 1]} : vector<8x512xf32> to vector<8x128xf32>
    %50 = arith.negf %49 : vector<8x128xf32>
    %51 = math.exp %50 : vector<8x128xf32>
    %cst_21 = arith.constant 1.000000e+00 : f32
    %52 = vector.broadcast %cst_21 : f32 to vector<8x128xf32>
    %53 = arith.addf %52, %51 : vector<8x128xf32>
    %54 = arith.divf %52, %53 : vector<8x128xf32>
    %55 = vector.extract_strided_slice %48 {offsets = [0, 128], sizes = [8, 128], strides = [1, 1]} : vector<8x512xf32> to vector<8x128xf32>
    %56 = arith.negf %55 : vector<8x128xf32>
    %57 = math.exp %56 : vector<8x128xf32>
    %cst_22 = arith.constant 1.000000e+00 : f32
    %58 = vector.broadcast %cst_22 : f32 to vector<8x128xf32>
    %59 = arith.addf %58, %57 : vector<8x128xf32>
    %60 = arith.divf %58, %59 : vector<8x128xf32>
    %61 = vector.extract_strided_slice %48 {offsets = [0, 256], sizes = [8, 128], strides = [1, 1]} : vector<8x512xf32> to vector<8x128xf32>
    %62 = math.tanh %61 : vector<8x128xf32>
    %63 = vector.extract_strided_slice %48 {offsets = [0, 384], sizes = [8, 128], strides = [1, 1]} : vector<8x512xf32> to vector<8x128xf32>
    %64 = arith.negf %63 : vector<8x128xf32>
    %65 = math.exp %64 : vector<8x128xf32>
    %cst_23 = arith.constant 1.000000e+00 : f32
    %66 = vector.broadcast %cst_23 : f32 to vector<8x128xf32>
    %67 = arith.addf %66, %65 : vector<8x128xf32>
    %68 = arith.divf %66, %67 : vector<8x128xf32>
    %69 = arith.mulf %60, %39 : vector<8x128xf32>
    %70 = arith.mulf %54, %62 : vector<8x128xf32>
    %71 = arith.addf %69, %70 : vector<8x128xf32>
    %72 = math.tanh %71 : vector<8x128xf32>
    %73 = arith.mulf %68, %72 : vector<8x128xf32>
    %c0_24 = arith.constant 0 : index
    %c1 = arith.constant 1 : index
    %c0_25 = arith.constant 0 : index
    %74 = vector.load %arg8[%c0_24, %c1, %c0_25] : memref<8x8x128xf32, #tpu.memory_space<vmem>>, vector<8x1x128xf32>
    %75 = vector.shape_cast %74 : vector<8x1x128xf32> to vector<8x128xf32>
    %76 = vector.shape_cast %73 : vector<8x128xf32> to vector<8x1x128xf32>
    tpu.vector_store %arg8[%c0_24, %c1, %c0_25], %76 {strides = array<i32>} : memref<8x8x128xf32, #tpu.memory_space<vmem>>, vector<8x1x128xf32>,
    %77 = vector.extract_strided_slice %9 {offsets = [16, 0], sizes = [8, 512], strides = [1, 1]} : vector<64x512xf32> to vector<8x512xf32>
    %78 = arith.truncf %73 : vector<8x128xf32> to vector<8x128xbf16>
    %cst_26 = arith.constant dense<0.000000e+00> : vector<8x512xf32>
    %79 = tpu.matmul %78, %10, %cst_26 {dimension_numbers = #tpu.dot_dimension_numbers<[1], [0], [0], [1], [0, 0, 1, 1], [], []>} : vector<8x128xbf16>, vector<128x512xbf16>, vector<8x512xf32> -> vector<8x512xf32>
    %80 = arith.addf %77, %79 : vector<8x512xf32>
    %81 = vector.extract_strided_slice %80 {offsets = [0, 0], sizes = [8, 128], strides = [1, 1]} : vector<8x512xf32> to vector<8x128xf32>
    %82 = arith.negf %81 : vector<8x128xf32>
    %83 = math.exp %82 : vector<8x128xf32>
    %cst_27 = arith.constant 1.000000e+00 : f32
    %84 = vector.broadcast %cst_27 : f32 to vector<8x128xf32>
    %85 = arith.addf %84, %83 : vector<8x128xf32>
    %86 = arith.divf %84, %85 : vector<8x128xf32>
    %87 = vector.extract_strided_slice %80 {offsets = [0, 128], sizes = [8, 128], strides = [1, 1]} : vector<8x512xf32> to vector<8x128xf32>
    %88 = arith.negf %87 : vector<8x128xf32>
    %89 = math.exp %88 : vector<8x128xf32>
    %cst_28 = arith.constant 1.000000e+00 : f32
    %90 = vector.broadcast %cst_28 : f32 to vector<8x128xf32>
    %91 = arith.addf %90, %89 : vector<8x128xf32>
    %92 = arith.divf %90, %91 : vector<8x128xf32>
    %93 = vector.extract_strided_slice %80 {offsets = [0, 256], sizes = [8, 128], strides = [1, 1]} : vector<8x512xf32> to vector<8x128xf32>
    %94 = math.tanh %93 : vector<8x128xf32>
    %95 = vector.extract_strided_slice %80 {offsets = [0, 384], sizes = [8, 128], strides = [1, 1]} : vector<8x512xf32> to vector<8x128xf32>
    %96 = arith.negf %95 : vector<8x128xf32>
    %97 = math.exp %96 : vector<8x128xf32>
    %cst_29 = arith.constant 1.000000e+00 : f32
    %98 = vector.broadcast %cst_29 : f32 to vector<8x128xf32>
    %99 = arith.addf %98, %97 : vector<8x128xf32>
    %100 = arith.divf %98, %99 : vector<8x128xf32>
    %101 = arith.mulf %92, %71 : vector<8x128xf32>
    %102 = arith.mulf %86, %94 : vector<8x128xf32>
    %103 = arith.addf %101, %102 : vector<8x128xf32>
    %104 = math.tanh %103 : vector<8x128xf32>
    %105 = arith.mulf %100, %104 : vector<8x128xf32>
    %c0_30 = arith.constant 0 : index
    %c2 = arith.constant 2 : index
    %c0_31 = arith.constant 0 : index
    %106 = vector.load %arg8[%c0_30, %c2, %c0_31] : memref<8x8x128xf32, #tpu.memory_space<vmem>>, vector<8x1x128xf32>
    %107 = vector.shape_cast %106 : vector<8x1x128xf32> to vector<8x128xf32>
    %108 = vector.shape_cast %105 : vector<8x128xf32> to vector<8x1x128xf32>
    tpu.vector_store %arg8[%c0_30, %c2, %c0_31], %108 {strides = array<i32>} : memref<8x8x128xf32, #tpu.memory_space<vmem>>, vector<8x1x128xf32>,
    %109 = vector.extract_strided_slice %9 {offsets = [24, 0], sizes = [8, 512], strides = [1, 1]} : vector<64x512xf32> to vector<8x512xf32>
    %110 = arith.truncf %105 : vector<8x128xf32> to vector<8x128xbf16>
    %cst_32 = arith.constant dense<0.000000e+00> : vector<8x512xf32>
    %111 = tpu.matmul %110, %10, %cst_32 {dimension_numbers = #tpu.dot_dimension_numbers<[1], [0], [0], [1], [0, 0, 1, 1], [], []>} : vector<8x128xbf16>, vector<128x512xbf16>, vector<8x512xf32> -> vector<8x512xf32>
    %112 = arith.addf %109, %111 : vector<8x512xf32>
    %113 = vector.extract_strided_slice %112 {offsets = [0, 0], sizes = [8, 128], strides = [1, 1]} : vector<8x512xf32> to vector<8x128xf32>
    %114 = arith.negf %113 : vector<8x128xf32>
    %115 = math.exp %114 : vector<8x128xf32>
    %cst_33 = arith.constant 1.000000e+00 : f32
    %116 = vector.broadcast %cst_33 : f32 to vector<8x128xf32>
    %117 = arith.addf %116, %115 : vector<8x128xf32>
    %118 = arith.divf %116, %117 : vector<8x128xf32>
    %119 = vector.extract_strided_slice %112 {offsets = [0, 128], sizes = [8, 128], strides = [1, 1]} : vector<8x512xf32> to vector<8x128xf32>
    %120 = arith.negf %119 : vector<8x128xf32>
    %121 = math.exp %120 : vector<8x128xf32>
    %cst_34 = arith.constant 1.000000e+00 : f32
    %122 = vector.broadcast %cst_34 : f32 to vector<8x128xf32>
    %123 = arith.addf %122, %121 : vector<8x128xf32>
    %124 = arith.divf %122, %123 : vector<8x128xf32>
    %125 = vector.extract_strided_slice %112 {offsets = [0, 256], sizes = [8, 128], strides = [1, 1]} : vector<8x512xf32> to vector<8x128xf32>
    %126 = math.tanh %125 : vector<8x128xf32>
    %127 = vector.extract_strided_slice %112 {offsets = [0, 384], sizes = [8, 128], strides = [1, 1]} : vector<8x512xf32> to vector<8x128xf32>
    %128 = arith.negf %127 : vector<8x128xf32>
    %129 = math.exp %128 : vector<8x128xf32>
    %cst_35 = arith.constant 1.000000e+00 : f32
    %130 = vector.broadcast %cst_35 : f32 to vector<8x128xf32>
    %131 = arith.addf %130, %129 : vector<8x128xf32>
    %132 = arith.divf %130, %131 : vector<8x128xf32>
    %133 = arith.mulf %124, %103 : vector<8x128xf32>
    %134 = arith.mulf %118, %126 : vector<8x128xf32>
    %135 = arith.addf %133, %134 : vector<8x128xf32>
    %136 = math.tanh %135 : vector<8x128xf32>
    %137 = arith.mulf %132, %136 : vector<8x128xf32>
    %c0_36 = arith.constant 0 : index
    %c3 = arith.constant 3 : index
    %c0_37 = arith.constant 0 : index
    %138 = vector.load %arg8[%c0_36, %c3, %c0_37] : memref<8x8x128xf32, #tpu.memory_space<vmem>>, vector<8x1x128xf32>
    %139 = vector.shape_cast %138 : vector<8x1x128xf32> to vector<8x128xf32>
    %140 = vector.shape_cast %137 : vector<8x128xf32> to vector<8x1x128xf32>
    tpu.vector_store %arg8[%c0_36, %c3, %c0_37], %140 {strides = array<i32>} : memref<8x8x128xf32, #tpu.memory_space<vmem>>, vector<8x1x128xf32>,
    %141 = vector.extract_strided_slice %9 {offsets = [32, 0], sizes = [8, 512], strides = [1, 1]} : vector<64x512xf32> to vector<8x512xf32>
    %142 = arith.truncf %137 : vector<8x128xf32> to vector<8x128xbf16>
    %cst_38 = arith.constant dense<0.000000e+00> : vector<8x512xf32>
    %143 = tpu.matmul %142, %10, %cst_38 {dimension_numbers = #tpu.dot_dimension_numbers<[1], [0], [0], [1], [0, 0, 1, 1], [], []>} : vector<8x128xbf16>, vector<128x512xbf16>, vector<8x512xf32> -> vector<8x512xf32>
    %144 = arith.addf %141, %143 : vector<8x512xf32>
    %145 = vector.extract_strided_slice %144 {offsets = [0, 0], sizes = [8, 128], strides = [1, 1]} : vector<8x512xf32> to vector<8x128xf32>
    %146 = arith.negf %145 : vector<8x128xf32>
    %147 = math.exp %146 : vector<8x128xf32>
    %cst_39 = arith.constant 1.000000e+00 : f32
    %148 = vector.broadcast %cst_39 : f32 to vector<8x128xf32>
    %149 = arith.addf %148, %147 : vector<8x128xf32>
    %150 = arith.divf %148, %149 : vector<8x128xf32>
    %151 = vector.extract_strided_slice %144 {offsets = [0, 128], sizes = [8, 128], strides = [1, 1]} : vector<8x512xf32> to vector<8x128xf32>
    %152 = arith.negf %151 : vector<8x128xf32>
    %153 = math.exp %152 : vector<8x128xf32>
    %cst_40 = arith.constant 1.000000e+00 : f32
    %154 = vector.broadcast %cst_40 : f32 to vector<8x128xf32>
    %155 = arith.addf %154, %153 : vector<8x128xf32>
    %156 = arith.divf %154, %155 : vector<8x128xf32>
    %157 = vector.extract_strided_slice %144 {offsets = [0, 256], sizes = [8, 128], strides = [1, 1]} : vector<8x512xf32> to vector<8x128xf32>
    %158 = math.tanh %157 : vector<8x128xf32>
    %159 = vector.extract_strided_slice %144 {offsets = [0, 384], sizes = [8, 128], strides = [1, 1]} : vector<8x512xf32> to vector<8x128xf32>
    %160 = arith.negf %159 : vector<8x128xf32>
    %161 = math.exp %160 : vector<8x128xf32>
    %cst_41 = arith.constant 1.000000e+00 : f32
    %162 = vector.broadcast %cst_41 : f32 to vector<8x128xf32>
    %163 = arith.addf %162, %161 : vector<8x128xf32>
    %164 = arith.divf %162, %163 : vector<8x128xf32>
    %165 = arith.mulf %156, %135 : vector<8x128xf32>
    %166 = arith.mulf %150, %158 : vector<8x128xf32>
    %167 = arith.addf %165, %166 : vector<8x128xf32>
    %168 = math.tanh %167 : vector<8x128xf32>
    %169 = arith.mulf %164, %168 : vector<8x128xf32>
    %c0_42 = arith.constant 0 : index
    %c4 = arith.constant 4 : index
    %c0_43 = arith.constant 0 : index
    %170 = vector.load %arg8[%c0_42, %c4, %c0_43] : memref<8x8x128xf32, #tpu.memory_space<vmem>>, vector<8x1x128xf32>
    %171 = vector.shape_cast %170 : vector<8x1x128xf32> to vector<8x128xf32>
    %172 = vector.shape_cast %169 : vector<8x128xf32> to vector<8x1x128xf32>
    tpu.vector_store %arg8[%c0_42, %c4, %c0_43], %172 {strides = array<i32>} : memref<8x8x128xf32, #tpu.memory_space<vmem>>, vector<8x1x128xf32>,
    %173 = vector.extract_strided_slice %9 {offsets = [40, 0], sizes = [8, 512], strides = [1, 1]} : vector<64x512xf32> to vector<8x512xf32>
    %174 = arith.truncf %169 : vector<8x128xf32> to vector<8x128xbf16>
    %cst_44 = arith.constant dense<0.000000e+00> : vector<8x512xf32>
    %175 = tpu.matmul %174, %10, %cst_44 {dimension_numbers = #tpu.dot_dimension_numbers<[1], [0], [0], [1], [0, 0, 1, 1], [], []>} : vector<8x128xbf16>, vector<128x512xbf16>, vector<8x512xf32> -> vector<8x512xf32>
    %176 = arith.addf %173, %175 : vector<8x512xf32>
    %177 = vector.extract_strided_slice %176 {offsets = [0, 0], sizes = [8, 128], strides = [1, 1]} : vector<8x512xf32> to vector<8x128xf32>
    %178 = arith.negf %177 : vector<8x128xf32>
    %179 = math.exp %178 : vector<8x128xf32>
    %cst_45 = arith.constant 1.000000e+00 : f32
    %180 = vector.broadcast %cst_45 : f32 to vector<8x128xf32>
    %181 = arith.addf %180, %179 : vector<8x128xf32>
    %182 = arith.divf %180, %181 : vector<8x128xf32>
    %183 = vector.extract_strided_slice %176 {offsets = [0, 128], sizes = [8, 128], strides = [1, 1]} : vector<8x512xf32> to vector<8x128xf32>
    %184 = arith.negf %183 : vector<8x128xf32>
    %185 = math.exp %184 : vector<8x128xf32>
    %cst_46 = arith.constant 1.000000e+00 : f32
    %186 = vector.broadcast %cst_46 : f32 to vector<8x128xf32>
    %187 = arith.addf %186, %185 : vector<8x128xf32>
    %188 = arith.divf %186, %187 : vector<8x128xf32>
    %189 = vector.extract_strided_slice %176 {offsets = [0, 256], sizes = [8, 128], strides = [1, 1]} : vector<8x512xf32> to vector<8x128xf32>
    %190 = math.tanh %189 : vector<8x128xf32>
    %191 = vector.extract_strided_slice %176 {offsets = [0, 384], sizes = [8, 128], strides = [1, 1]} : vector<8x512xf32> to vector<8x128xf32>
    %192 = arith.negf %191 : vector<8x128xf32>
    %193 = math.exp %192 : vector<8x128xf32>
    %cst_47 = arith.constant 1.000000e+00 : f32
    %194 = vector.broadcast %cst_47 : f32 to vector<8x128xf32>
    %195 = arith.addf %194, %193 : vector<8x128xf32>
    %196 = arith.divf %194, %195 : vector<8x128xf32>
    %197 = arith.mulf %188, %167 : vector<8x128xf32>
    %198 = arith.mulf %182, %190 : vector<8x128xf32>
    %199 = arith.addf %197, %198 : vector<8x128xf32>
    %200 = math.tanh %199 : vector<8x128xf32>
    %201 = arith.mulf %196, %200 : vector<8x128xf32>
    %c0_48 = arith.constant 0 : index
    %c5 = arith.constant 5 : index
    %c0_49 = arith.constant 0 : index
    %202 = vector.load %arg8[%c0_48, %c5, %c0_49] : memref<8x8x128xf32, #tpu.memory_space<vmem>>, vector<8x1x128xf32>
    %203 = vector.shape_cast %202 : vector<8x1x128xf32> to vector<8x128xf32>
    %204 = vector.shape_cast %201 : vector<8x128xf32> to vector<8x1x128xf32>
    tpu.vector_store %arg8[%c0_48, %c5, %c0_49], %204 {strides = array<i32>} : memref<8x8x128xf32, #tpu.memory_space<vmem>>, vector<8x1x128xf32>,
    %205 = vector.extract_strided_slice %9 {offsets = [48, 0], sizes = [8, 512], strides = [1, 1]} : vector<64x512xf32> to vector<8x512xf32>
    %206 = arith.truncf %201 : vector<8x128xf32> to vector<8x128xbf16>
    %cst_50 = arith.constant dense<0.000000e+00> : vector<8x512xf32>
    %207 = tpu.matmul %206, %10, %cst_50 {dimension_numbers = #tpu.dot_dimension_numbers<[1], [0], [0], [1], [0, 0, 1, 1], [], []>} : vector<8x128xbf16>, vector<128x512xbf16>, vector<8x512xf32> -> vector<8x512xf32>
    %208 = arith.addf %205, %207 : vector<8x512xf32>
    %209 = vector.extract_strided_slice %208 {offsets = [0, 0], sizes = [8, 128], strides = [1, 1]} : vector<8x512xf32> to vector<8x128xf32>
    %210 = arith.negf %209 : vector<8x128xf32>
    %211 = math.exp %210 : vector<8x128xf32>
    %cst_51 = arith.constant 1.000000e+00 : f32
    %212 = vector.broadcast %cst_51 : f32 to vector<8x128xf32>
    %213 = arith.addf %212, %211 : vector<8x128xf32>
    %214 = arith.divf %212, %213 : vector<8x128xf32>
    %215 = vector.extract_strided_slice %208 {offsets = [0, 128], sizes = [8, 128], strides = [1, 1]} : vector<8x512xf32> to vector<8x128xf32>
    %216 = arith.negf %215 : vector<8x128xf32>
    %217 = math.exp %216 : vector<8x128xf32>
    %cst_52 = arith.constant 1.000000e+00 : f32
    %218 = vector.broadcast %cst_52 : f32 to vector<8x128xf32>
    %219 = arith.addf %218, %217 : vector<8x128xf32>
    %220 = arith.divf %218, %219 : vector<8x128xf32>
    %221 = vector.extract_strided_slice %208 {offsets = [0, 256], sizes = [8, 128], strides = [1, 1]} : vector<8x512xf32> to vector<8x128xf32>
    %222 = math.tanh %221 : vector<8x128xf32>
    %223 = vector.extract_strided_slice %208 {offsets = [0, 384], sizes = [8, 128], strides = [1, 1]} : vector<8x512xf32> to vector<8x128xf32>
    %224 = arith.negf %223 : vector<8x128xf32>
    %225 = math.exp %224 : vector<8x128xf32>
    %cst_53 = arith.constant 1.000000e+00 : f32
    %226 = vector.broadcast %cst_53 : f32 to vector<8x128xf32>
    %227 = arith.addf %226, %225 : vector<8x128xf32>
    %228 = arith.divf %226, %227 : vector<8x128xf32>
    %229 = arith.mulf %220, %199 : vector<8x128xf32>
    %230 = arith.mulf %214, %222 : vector<8x128xf32>
    %231 = arith.addf %229, %230 : vector<8x128xf32>
    %232 = math.tanh %231 : vector<8x128xf32>
    %233 = arith.mulf %228, %232 : vector<8x128xf32>
    %c0_54 = arith.constant 0 : index
    %c6 = arith.constant 6 : index
    %c0_55 = arith.constant 0 : index
    %234 = vector.load %arg8[%c0_54, %c6, %c0_55] : memref<8x8x128xf32, #tpu.memory_space<vmem>>, vector<8x1x128xf32>
    %235 = vector.shape_cast %234 : vector<8x1x128xf32> to vector<8x128xf32>
    %236 = vector.shape_cast %233 : vector<8x128xf32> to vector<8x1x128xf32>
    tpu.vector_store %arg8[%c0_54, %c6, %c0_55], %236 {strides = array<i32>} : memref<8x8x128xf32, #tpu.memory_space<vmem>>, vector<8x1x128xf32>,
    %237 = vector.extract_strided_slice %9 {offsets = [56, 0], sizes = [8, 512], strides = [1, 1]} : vector<64x512xf32> to vector<8x512xf32>
    %238 = arith.truncf %233 : vector<8x128xf32> to vector<8x128xbf16>
    %cst_56 = arith.constant dense<0.000000e+00> : vector<8x512xf32>
    %239 = tpu.matmul %238, %10, %cst_56 {dimension_numbers = #tpu.dot_dimension_numbers<[1], [0], [0], [1], [0, 0, 1, 1], [], []>} : vector<8x128xbf16>, vector<128x512xbf16>, vector<8x512xf32> -> vector<8x512xf32>
    %240 = arith.addf %237, %239 : vector<8x512xf32>
    %241 = vector.extract_strided_slice %240 {offsets = [0, 0], sizes = [8, 128], strides = [1, 1]} : vector<8x512xf32> to vector<8x128xf32>
    %242 = arith.negf %241 : vector<8x128xf32>
    %243 = math.exp %242 : vector<8x128xf32>
    %cst_57 = arith.constant 1.000000e+00 : f32
    %244 = vector.broadcast %cst_57 : f32 to vector<8x128xf32>
    %245 = arith.addf %244, %243 : vector<8x128xf32>
    %246 = arith.divf %244, %245 : vector<8x128xf32>
    %247 = vector.extract_strided_slice %240 {offsets = [0, 128], sizes = [8, 128], strides = [1, 1]} : vector<8x512xf32> to vector<8x128xf32>
    %248 = arith.negf %247 : vector<8x128xf32>
    %249 = math.exp %248 : vector<8x128xf32>
    %cst_58 = arith.constant 1.000000e+00 : f32
    %250 = vector.broadcast %cst_58 : f32 to vector<8x128xf32>
    %251 = arith.addf %250, %249 : vector<8x128xf32>
    %252 = arith.divf %250, %251 : vector<8x128xf32>
    %253 = vector.extract_strided_slice %240 {offsets = [0, 256], sizes = [8, 128], strides = [1, 1]} : vector<8x512xf32> to vector<8x128xf32>
    %254 = math.tanh %253 : vector<8x128xf32>
    %255 = vector.extract_strided_slice %240 {offsets = [0, 384], sizes = [8, 128], strides = [1, 1]} : vector<8x512xf32> to vector<8x128xf32>
    %256 = arith.negf %255 : vector<8x128xf32>
    %257 = math.exp %256 : vector<8x128xf32>
    %cst_59 = arith.constant 1.000000e+00 : f32
    %258 = vector.broadcast %cst_59 : f32 to vector<8x128xf32>
    %259 = arith.addf %258, %257 : vector<8x128xf32>
    %260 = arith.divf %258, %259 : vector<8x128xf32>
    %261 = arith.mulf %252, %231 : vector<8x128xf32>
    %262 = arith.mulf %246, %254 : vector<8x128xf32>
    %263 = arith.addf %261, %262 : vector<8x128xf32>
    %264 = math.tanh %263 : vector<8x128xf32>
    %265 = arith.mulf %260, %264 : vector<8x128xf32>
    %c0_60 = arith.constant 0 : index
    %c7 = arith.constant 7 : index
    %c0_61 = arith.constant 0 : index
    %266 = vector.load %arg8[%c0_60, %c7, %c0_61] : memref<8x8x128xf32, #tpu.memory_space<vmem>>, vector<8x1x128xf32>
    %267 = vector.shape_cast %266 : vector<8x1x128xf32> to vector<8x128xf32>
    %268 = vector.shape_cast %265 : vector<8x128xf32> to vector<8x1x128xf32>
    tpu.vector_store %arg8[%c0_60, %c7, %c0_61], %268 {strides = array<i32>} : memref<8x8x128xf32, #tpu.memory_space<vmem>>, vector<8x1x128xf32>,
    %c0_62 = arith.constant 0 : index
    %c0_63 = arith.constant 0 : index
    %269 = vector.load %arg11[%c0_62, %c0_63] : memref<8x128xf32, #tpu.memory_space<vmem>>, vector<8x128xf32>
    tpu.vector_store %arg11[%c0_62, %c0_63], %265 {strides = array<i32>} : memref<8x128xf32, #tpu.memory_space<vmem>>, vector<8x128xf32>,
    %c0_64 = arith.constant 0 : index
    %c0_65 = arith.constant 0 : index
    %270 = vector.load %arg12[%c0_64, %c0_65] : memref<8x128xf32, #tpu.memory_space<vmem>>, vector<8x128xf32>
    tpu.vector_store %arg12[%c0_64, %c0_65], %263 {strides = array<i32>} : memref<8x128xf32, #tpu.memory_space<vmem>>, vector<8x128xf32>,
    %c1_i32 = arith.constant 1 : i32
    %271 = arith.cmpi eq, %arg1, %c1_i32 : i32
    %272 = arith.extui %271 : i1 to i32
    %c0_i32_66 = arith.constant 0 : i32
    %273 = arith.cmpi ne, %272, %c0_i32_66 : i32
    scf.if %273 {
      %c0_67 = arith.constant 0 : index
      %c0_68 = arith.constant 0 : index
      %274 = vector.load %arg9[%c0_67, %c0_68] : memref<8x128xf32, #tpu.memory_space<vmem>>, vector<8x128xf32>
      tpu.vector_store %arg9[%c0_67, %c0_68], %265 {strides = array<i32>} : memref<8x128xf32, #tpu.memory_space<vmem>>, vector<8x128xf32>,
      %c0_69 = arith.constant 0 : index
      %c0_70 = arith.constant 0 : index
      %275 = vector.load %arg10[%c0_69, %c0_70] : memref<8x128xf32, #tpu.memory_space<vmem>>, vector<8x128xf32>
      tpu.vector_store %arg10[%c0_69, %c0_70], %263 {strides = array<i32>} : memref<8x128xf32, #tpu.memory_space<vmem>>, vector<8x128xf32>,
    } else {
    }
    return
  }
  func.func @transform_0(%arg0: i32, %arg1: i32) -> (i32, i32, i32) {
    %c0_i32 = arith.constant 0 : i32
    %c0_i32_0 = arith.constant 0 : i32
    return %arg1, %arg0, %c0_i32 : i32, i32, i32
  }
  func.func @transform_1(%arg0: i32, %arg1: i32) -> (i32, i32) {
    %c0_i32 = arith.constant 0 : i32
    %c0_i32_0 = arith.constant 0 : i32
    %c0_i32_1 = arith.constant 0 : i32
    return %c0_i32, %c0_i32_0 : i32, i32
  }
  func.func @transform_2(%arg0: i32, %arg1: i32) -> (i32, i32) {
    %c0_i32 = arith.constant 0 : i32
    %c0_i32_0 = arith.constant 0 : i32
    %c0_i32_1 = arith.constant 0 : i32
    return %c0_i32, %c0_i32_0 : i32, i32
  }
  func.func @transform_3(%arg0: i32, %arg1: i32) -> (i32, i32) {
    %c0_i32 = arith.constant 0 : i32
    %c0_i32_0 = arith.constant 0 : i32
    %c0_i32_1 = arith.constant 0 : i32
    return %c0_i32, %c0_i32_0 : i32, i32
  }
  func.func @transform_4(%arg0: i32, %arg1: i32) -> (i32, i32) {
    %c0_i32 = arith.constant 0 : i32
    %c0_i32_0 = arith.constant 0 : i32
    return %arg0, %c0_i32 : i32, i32
  }
  func.func @transform_5(%arg0: i32, %arg1: i32) -> (i32, i32) {
    %c0_i32 = arith.constant 0 : i32
    %c0_i32_0 = arith.constant 0 : i32
    return %arg0, %c0_i32 : i32, i32
  }
  func.func @transform_6(%arg0: i32, %arg1: i32) -> (i32, i32, i32) {
    %c0_i32 = arith.constant 0 : i32
    %c0_i32_0 = arith.constant 0 : i32
    return %arg0, %arg1, %c0_i32 : i32, i32, i32
  }
  func.func @transform_7(%arg0: i32, %arg1: i32) -> (i32, i32) {
    %c0_i32 = arith.constant 0 : i32
    %c0_i32_0 = arith.constant 0 : i32
    return %arg0, %c0_i32 : i32, i32
  }
  func.func @transform_8(%arg0: i32, %arg1: i32) -> (i32, i32) {
    %c0_i32 = arith.constant 0 : i32
    %c0_i32_0 = arith.constant 0 : i32
    return %arg0, %c0_i32 : i32, i32
  }
}

</mosaic_0001>

<llo_original>
// kernel: encoder_forward.1
$region0: #{encoder_forward.1}
  #allocation0 [shape = 'u32[]', space=smem, size = 0x4, offset = 0x4, fixed_abs, tag = 'smem constant byte address 0x4 - core index']
  #allocation1 [shape = 'u32[144,128]{1,0:T(1,128)}', space=vmem, size = 0x12000, scoped, tag = 'internal scratch']
  #allocation2 [shape = 'f32[8,128]{1,0:T(8,128)}', space=vmem, size = 0x1000, scoped, tag = 'scratch operand']
  #allocation3 [shape = 'f32[8,128]{1,0:T(8,128)}', space=vmem, size = 0x1000, scoped, tag = 'scratch operand']
  %s0 = inlined_call_operand.vmem [shape: bf16[16,8,16], index: 0, kind: input, shape index: {}]
  %s1 = inlined_call_operand.vmem [shape: bf16[16,512], index: 1, kind: input, shape index: {}]
  %s2 = inlined_call_operand.vmem [shape: bf16[128,512], index: 2, kind: input, shape index: {}]
  %s3 = inlined_call_operand.vmem [shape: f32[1,512], index: 3, kind: input, shape index: {}]
  %s4 = inlined_call_operand.vmem [shape: f32[8,128], index: 4, kind: input, shape index: {}]
  %s5 = inlined_call_operand.vmem [shape: f32[8,128], index: 5, kind: input, shape index: {}]
  %s6 = inlined_call_operand.vmem [shape: f32[8,16,128], index: 6, kind: output, shape index: {0}]
  %s7 = inlined_call_operand.vmem [shape: f32[8,128], index: 7, kind: output, shape index: {1}]
  %s8 = inlined_call_operand.vmem [shape: f32[8,128], index: 8, kind: output, shape index: {2}]
  %9 = xla_tuple %s6, %s7, %s8
  %s10 = sld [smem:[#allocation0]]
  $region115: #{encoder_forward.1} parent=0
    _
  %s12 = ssub.s32 1, %s10
  %s13 = scalar_select 0, %s12, %s10
  $region1: #{encoder_forward.1} parent=0
    #allocation4 [shape = 'u8[65536]{0}', space=vmem, size = 0x10000, scoped, tag = 'output window, operand 0']
    loop: start=0, step=1, limit=4
    $region2: #{encoder_forward.1} parent=1 // loop_pre_header
      _
    $region3: #{encoder_forward.1} parent=1 // loop_header
      %s15 = sphi 0, %s19
      %p16 = scmp.ge.s32.totalorder %s15, 4
      %s22 = sphi 0, %s34
      %s23 = sphi 0, %s30
      %s24 = sphi 0, %s22
      %s25 = sphi 0, %s23
      %s26 = sphi 0, %s24
      %s27 = sphi 0, %s25
      %s39 = sphi 0, %s41
      %s42 = sphi 0, %s39
      %s43 = sphi 0, %s42
      %s59 = sphi 0, %s43
      %s63 = sphi 0, %s63
      %s65 = sphi 0, %s63
      %s66 = sphi 0, %s65
      %s80 = sphi 0, %s66
      %s84 = sphi 0, %s84
      %s86 = sphi 0, %s84
      %s87 = sphi 0, %s86
      %s101 = sphi 0, %s87
      %s105 = sphi 0, %s105
      %s107 = sphi 0, %s105
      %s108 = sphi 0, %s107
      %s122 = sphi 0, %s108
      %s128 = sphi 0, %s130
      %s131 = sphi 0, %s128
      %s132 = sphi 0, %s131
      %s148 = sphi 0, %s132
      %s154 = sphi 0, %s156
      %s157 = sphi 0, %s154
      %s158 = sphi 0, %s157
      %s174 = sphi 0, %s158
      %s182 = sphi 0, %s184
      %s185 = sphi 0, %s182
      %s186 = sphi 0, %s185
      %s202 = sphi 0, %s186
      %s208 = sphi 0, %s210
      %s211 = sphi 0, %s208
      %s212 = sphi 0, %s211
      %s228 = sphi 0, %s212
      %s234 = sphi 0, %s236
      %s237 = sphi 0, %s234
      %s238 = sphi 0, %s237
      %s254 = sphi 0, %s238
    $region4: #{encoder_forward.1} parent=1 // loop_header_branch
      %18 = sbr.rel (%p16) target = $region8
    $region5: #{encoder_forward.1} parent=1 // loop_body
      %s20 = ssub.s32 %s15, 1
      %s21 = ssub.s32 %s15, 2
      %s28 = sadd.s32 1, %s23
      %p29 = scmp.ge.s32.totalorder %s28, 2
      %s30 = scalar_select %p29, 0, %s28
      %s31 = sadd.s32 1, %s22
      %s32 = scalar_select %p29, %s31, %s22
      %p33 = scmp.ge.s32.totalorder %s32, 1
      %s34 = scalar_select %p33, 0, %s32
      %s35 = ssub.s32 %s23, %s30
      %s36 = ssub.s32 %s22, %s34
      %s37 = sor.u32 %s35, %s36
      %p38 = scmp.eq.s32.totalorder %s37, 0
      %s40 = sadd.s32 %s39, 1
      %s41 = scalar_select %p38, %s39, %s40
      %p44 = pneg %p38
      %p45 = scmp.eq.s32.totalorder %s15, 1
      %p46 = por %p44, %p45
      %p47 = scmp.ne.s32.totalorder %s39, %s42
      %p48 = scmp.eq.s32.totalorder %s15, 0
      %p49 = por %p47, %p48
      %p50 = scmp.ne.s32.totalorder %s39, %s42
      %p51 = scmp.eq.s32.totalorder %s20, 1
      %p52 = por %p50, %p51
      %p53 = scmp.ne.s32.totalorder %s42, %s43
      %p54 = scmp.eq.s32.totalorder %s20, 0
      %p55 = por %p53, %p54
      %p56 = scmp.ne.s32.totalorder %s42, %s43
      %p57 = scmp.eq.s32.totalorder %s21, 1
      %p58 = por %p56, %p57
      %p60 = scmp.ne.s32.totalorder %s43, %s59
      %p61 = scmp.eq.s32.totalorder %s21, 0
      %p62 = por %p60, %p61
      %s64 = sadd.s32 %s63, 1
      %p67 = scmp.eq.s32.totalorder %s15, 1
      %p68 = scmp.ne.s32.totalorder %s63, %s65
      %p69 = scmp.eq.s32.totalorder %s15, 0
      %p70 = por %p68, %p69
      %p71 = scmp.ne.s32.totalorder %s63, %s65
      %p72 = scmp.eq.s32.totalorder %s20, 1
      %p73 = por %p71, %p72
      %p74 = scmp.ne.s32.totalorder %s65, %s66
      %p75 = scmp.eq.s32.totalorder %s20, 0
      %p76 = por %p74, %p75
      %p77 = scmp.ne.s32.totalorder %s65, %s66
      %p78 = scmp.eq.s32.totalorder %s21, 1
      %p79 = por %p77, %p78
      %p81 = scmp.ne.s32.totalorder %s66, %s80
      %p82 = scmp.eq.s32.totalorder %s21, 0
      %p83 = por %p81, %p82
      %s85 = sadd.s32 %s84, 1
      %p88 = scmp.eq.s32.totalorder %s15, 1
      %p89 = scmp.ne.s32.totalorder %s84, %s86
      %p90 = scmp.eq.s32.totalorder %s15, 0
      %p91 = por %p89, %p90
      %p92 = scmp.ne.s32.totalorder %s84, %s86
      %p93 = scmp.eq.s32.totalorder %s20, 1
      %p94 = por %p92, %p93
      %p95 = scmp.ne.s32.totalorder %s86, %s87
      %p96 = scmp.eq.s32.totalorder %s20, 0
      %p97 = por %p95, %p96
      %p98 = scmp.ne.s32.totalorder %s86, %s87
      %p99 = scmp.eq.s32.totalorder %s21, 1
      %p100 = por %p98, %p99
      %p102 = scmp.ne.s32.totalorder %s87, %s101
      %p103 = scmp.eq.s32.totalorder %s21, 0
      %p104 = por %p102, %p103
      %s106 = sadd.s32 %s105, 1
      %p109 = scmp.eq.s32.totalorder %s15, 1
      %p110 = scmp.ne.s32.totalorder %s105, %s107
      %p111 = scmp.eq.s32.totalorder %s15, 0
      %p112 = por %p110, %p111
      %p113 = scmp.ne.s32.totalorder %s105, %s107
      %p114 = scmp.eq.s32.totalorder %s20, 1
      %p115 = por %p113, %p114
      %p116 = scmp.ne.s32.totalorder %s107, %s108
      %p117 = scmp.eq.s32.totalorder %s20, 0
      %p118 = por %p116, %p117
      %p119 = scmp.ne.s32.totalorder %s107, %s108
      %p120 = scmp.eq.s32.totalorder %s21, 1
      %p121 = por %p119, %p120
      %p123 = scmp.ne.s32.totalorder %s108, %s122
      %p124 = scmp.eq.s32.totalorder %s21, 0
      %p125 = por %p123, %p124
      %s126 = ssub.s32 %s22, %s34
      %p127 = scmp.eq.s32.totalorder %s126, 0
      %s129 = sadd.s32 %s128, 1
      %s130 = scalar_select %p127, %s128, %s129
      %p133 = pneg %p127
      %p134 = scmp.eq.s32.totalorder %s15, 1
      %p135 = por %p133, %p134
      %p136 = scmp.ne.s32.totalorder %s128, %s131
      %p137 = scmp.eq.s32.totalorder %s15, 0
      %p138 = por %p136, %p137
      %p139 = scmp.ne.s32.totalorder %s128, %s131
      %p140 = scmp.eq.s32.totalorder %s20, 1
      %p141 = por %p139, %p140
      %p142 = scmp.ne.s32.totalorder %s131, %s132
      %p143 = scmp.eq.s32.totalorder %s20, 0
      %p144 = por %p142, %p143
      %p145 = scmp.ne.s32.totalorder %s131, %s132
      %p146 = scmp.eq.s32.totalorder %s21, 1
      %p147 = por %p145, %p146
      %p149 = scmp.ne.s32.totalorder %s132, %s148
      %p150 = scmp.eq.s32.totalorder %s21, 0
      %p151 = por %p149, %p150
      %s152 = ssub.s32 %s22, %s34
      %p153 = scmp.eq.s32.totalorder %s152, 0
      %s155 = sadd.s32 %s154, 1
      %s156 = scalar_select %p153, %s154, %s155
      %p159 = pneg %p153
      %p160 = scmp.eq.s32.totalorder %s15, 1
      %p161 = por %p159, %p160
      %p162 = scmp.ne.s32.totalorder %s154, %s157
      %p163 = scmp.eq.s32.totalorder %s15, 0
      %p164 = por %p162, %p163
      %p165 = scmp.ne.s32.totalorder %s154, %s157
      %p166 = scmp.eq.s32.totalorder %s20, 1
      %p167 = por %p165, %p166
      %p168 = scmp.ne.s32.totalorder %s157, %s158
      %p169 = scmp.eq.s32.totalorder %s20, 0
      %p170 = por %p168, %p169
      %p171 = scmp.ne.s32.totalorder %s157, %s158
      %p172 = scmp.eq.s32.totalorder %s21, 1
      %p173 = por %p171, %p172
      %p175 = scmp.ne.s32.totalorder %s158, %s174
      %p176 = scmp.eq.s32.totalorder %s21, 0
      %p177 = por %p175, %p176
      %s178 = ssub.s32 %s22, %s34
      %s179 = ssub.s32 %s23, %s30
      %s180 = sor.u32 %s178, %s179
      %p181 = scmp.eq.s32.totalorder %s180, 0
      %s183 = sadd.s32 %s182, 1
      %s184 = scalar_select %p181, %s182, %s183
      %p187 = pneg %p181
      %p188 = scmp.eq.s32.totalorder %s15, 1
      %p189 = por %p187, %p188
      %p190 = scmp.ne.s32.totalorder %s182, %s185
      %p191 = scmp.eq.s32.totalorder %s15, 0
      %p192 = por %p190, %p191
      %p193 = scmp.ne.s32.totalorder %s182, %s185
      %p194 = scmp.eq.s32.totalorder %s20, 1
      %p195 = por %p193, %p194
      %p196 = scmp.ne.s32.totalorder %s185, %s186
      %p197 = scmp.eq.s32.totalorder %s20, 0
      %p198 = por %p196, %p197
      %p199 = scmp.ne.s32.totalorder %s185, %s186
      %p200 = scmp.eq.s32.totalorder %s21, 1
      %p201 = por %p199, %p200
      %p203 = scmp.ne.s32.totalorder %s186, %s202
      %p204 = scmp.eq.s32.totalorder %s21, 0
      %p205 = por %p203, %p204
      %s206 = ssub.s32 %s22, %s34
      %p207 = scmp.eq.s32.totalorder %s206, 0
      %s209 = sadd.s32 %s208, 1
      %s210 = scalar_select %p207, %s208, %s209
      %p213 = pneg %p207
      %p214 = scmp.eq.s32.totalorder %s15, 1
      %p215 = por %p213, %p214
      %p216 = scmp.ne.s32.totalorder %s208, %s211
      %p217 = scmp.eq.s32.totalorder %s15, 0
      %p218 = por %p216, %p217
      %p219 = scmp.ne.s32.totalorder %s208, %s211
      %p220 = scmp.eq.s32.totalorder %s20, 1
      %p221 = por %p219, %p220
      %p222 = scmp.ne.s32.totalorder %s211, %s212
      %p223 = scmp.eq.s32.totalorder %s20, 0
      %p224 = por %p222, %p223
      %p225 = scmp.ne.s32.totalorder %s211, %s212
      %p226 = scmp.eq.s32.totalorder %s21, 1
      %p227 = por %p225, %p226
      %p229 = scmp.ne.s32.totalorder %s212, %s228
      %p230 = scmp.eq.s32.totalorder %s21, 0
      %p231 = por %p229, %p230
      %s232 = ssub.s32 %s22, %s34
      %p233 = scmp.eq.s32.totalorder %s232, 0
      %s235 = sadd.s32 %s234, 1
      %s236 = scalar_select %p233, %s234, %s235
      %p239 = pneg %p233
      %p240 = scmp.eq.s32.totalorder %s15, 1
      %p241 = por %p239, %p240
      %p242 = scmp.ne.s32.totalorder %s234, %s237
      %p243 = scmp.eq.s32.totalorder %s15, 0
      %p244 = por %p242, %p243
      %p245 = scmp.ne.s32.totalorder %s234, %s237
      %p246 = scmp.eq.s32.totalorder %s20, 1
      %p247 = por %p245, %p246
      %p248 = scmp.ne.s32.totalorder %s237, %s238
      %p249 = scmp.eq.s32.totalorder %s20, 0
      %p250 = por %p248, %p249
      %p251 = scmp.ne.s32.totalorder %s237, %s238
      %p252 = scmp.eq.s32.totalorder %s21, 1
      %p253 = por %p251, %p252
      %p255 = scmp.ne.s32.totalorder %s238, %s254
      %p256 = scmp.eq.s32.totalorder %s21, 0
      %p257 = por %p255, %p256
      %p258 = scmp.le.s32.totalorder 1, %s15
      %p259 = scmp.lt.s32.totalorder %s15, 3
      %p260 = pnand %p258, %p259
      %p261 = pneg %p260
      // Predicated region
      $region9: #{encoder_forward.1} parent=5 // pred_check
        _
      $region10: #{encoder_forward.1} parent=5 // pred_check_branch
        %263 = sbr.rel (%p260) target = $region12
      $region11: #{encoder_forward.1} parent=5 // pred_region
        %s264 = ssub.s32 %s15, 1
        // Predicated region
        $region13: #{encoder_forward.1} parent=11 // pred_check
          %p265 = pneg %p76
        $region14: #{encoder_forward.1} parent=11 // pred_check_branch
          %267 = sbr.rel (%p265) target = $region16
        $region15: #{encoder_forward.1} parent=11 // pred_region
          _
        $region16: #{encoder_forward.1} parent=11 // pred_fallthru
          _
        // Predicated region
        $region17: #{encoder_forward.1} parent=11 // pred_check
          %p268 = pneg %p97
        $region18: #{encoder_forward.1} parent=11 // pred_check_branch
          %270 = sbr.rel (%p268) target = $region20
        $region19: #{encoder_forward.1} parent=11 // pred_region
          _
        $region20: #{encoder_forward.1} parent=11 // pred_fallthru
          _
        // Predicated region
        $region21: #{encoder_forward.1} parent=11 // pred_check
          %p271 = pneg %p118
        $region22: #{encoder_forward.1} parent=11 // pred_check_branch
          %273 = sbr.rel (%p271) target = $region24
        $region23: #{encoder_forward.1} parent=11 // pred_region
          _
        $region24: #{encoder_forward.1} parent=11 // pred_fallthru
          _
        // Predicated region
        $region25: #{encoder_forward.1} parent=11 // pred_check
          %p274 = pneg %p144
        $region26: #{encoder_forward.1} parent=11 // pred_check_branch
          %276 = sbr.rel (%p274) target = $region28
        $region27: #{encoder_forward.1} parent=11 // pred_region
          %p277 = scmp.lt.s32.totalorder %s24, 0
          %s278 = scalar_select %p277, %s24, 0
          %s279 = smul.addr %s278, 8
          %s280 = scalar_lea.vmem %s4, %s279
        $region28: #{encoder_forward.1} parent=11 // pred_fallthru
          _
        // Predicated region
        $region29: #{encoder_forward.1} parent=11 // pred_check
          %p281 = pneg %p170
        $region30: #{encoder_forward.1} parent=11 // pred_check_branch
          %283 = sbr.rel (%p281) target = $region32
        $region31: #{encoder_forward.1} parent=11 // pred_region
          %p284 = scmp.lt.s32.totalorder %s24, 0
          %s285 = scalar_select %p284, %s24, 0
          %s286 = smul.addr %s285, 8
          %s287 = scalar_lea.vmem %s5, %s286
        $region32: #{encoder_forward.1} parent=11 // pred_fallthru
          _
      $region12: #{encoder_forward.1} parent=5 // pred_fallthru
        _
      %p288 = scmp.lt.s32.totalorder %s15, 2
      // Predicated region
      $region33: #{encoder_forward.1} parent=5 // pred_check
        %p289 = pneg %p288
      $region34: #{encoder_forward.1} parent=5 // pred_check_branch
        %291 = sbr.rel (%p289) target = $region36
      $region35: #{encoder_forward.1} parent=5 // pred_region
        // Predicated region
        $region37: #{encoder_forward.1} parent=35 // pred_check
          %p292 = pneg %p49
        $region38: #{encoder_forward.1} parent=35 // pred_check_branch
          %294 = sbr.rel (%p292) target = $region40
        $region39: #{encoder_forward.1} parent=35 // pred_region
          %s295 = smul.u32 8, %s23
          %p296 = scmp.lt.s32.totalorder %s295, 15
          %s297 = scalar_select %p296, %s295, 15
          %p298 = scmp.lt.s32.totalorder %s22, 0
          %s299 = scalar_select %p298, %s22, 0
          %s300 = sadd.s32 %s299, %s297
          %s301 = smul.addr %s300, 4
          %s302 = scalar_lea.vmem %s0, %s301
          %s303 = smul.u32 8, %s23
        $region40: #{encoder_forward.1} parent=35 // pred_fallthru
          _
      $region36: #{encoder_forward.1} parent=5 // pred_fallthru
        _
      %p304 = scmp.le.s32.totalorder 1, %s15
      %p305 = scmp.lt.s32.totalorder %s15, 3
      %p306 = pnand %p304, %p305
      %p307 = pneg %p306
      // Predicated region
      $region41: #{encoder_forward.1} parent=5 // pred_check
        _
      $region42: #{encoder_forward.1} parent=5 // pred_check_branch
        %309 = sbr.rel (%p306) target = $region44
      $region43: #{encoder_forward.1} parent=5 // pred_region
        %s310 = ssub.s32 %s15, 1
        %s311 = smul.u32 8, %s25
        %p312 = scmp.lt.s32.totalorder %s311, 15
        %s313 = scalar_select %p312, %s311, 15
        %p314 = scmp.lt.s32.totalorder %s24, 0
        %s315 = scalar_select %p314, %s24, 0
        %s316 = sadd.s32 %s315, %s313
        %s317 = smul.addr %s316, 4
        %s318 = scalar_lea.vmem %s0, %s317
        %p319 = pneg %p55
        %p320 = pneg %p52
        %p321 = pneg %p76
        %p322 = pneg %p73
        %p323 = pneg %p97
        %p324 = pneg %p94
        %p325 = pneg %p118
        %p326 = pneg %p115
        %p327 = scmp.lt.s32.totalorder %s24, 0
        %s328 = scalar_select %p327, %s24, 0
        %s329 = smul.addr %s328, 8
        %s330 = scalar_lea.vmem %s4, %s329
        %p331 = pneg %p144
        %p332 = pneg %p141
        %p333 = scmp.lt.s32.totalorder %s24, 0
        %s334 = scalar_select %p333, %s24, 0
        %s335 = smul.addr %s334, 8
        %s336 = scalar_lea.vmem %s5, %s335
        %p337 = pneg %p170
        %p338 = pneg %p167
        %p339 = pneg %p198
        %p340 = pneg %p195
        %s341 = sand.u32 %s185, 1
        %s342 = sand.u32 %s185, 1
        %s343 = smul.addr %s342, 64
        %s344 = scalar_lea.vmem [#allocation4], %s343
        %p345 = pneg %p224
        %p346 = pneg %p221
        %p347 = scmp.lt.s32.totalorder %s24, 0
        %s348 = scalar_select %p347, %s24, 0
        %s349 = smul.addr %s348, 8
        %s350 = scalar_lea.vmem %s7, %s349
        %p351 = pneg %p250
        %p352 = pneg %p247
        %p353 = scmp.lt.s32.totalorder %s24, 0
        %s354 = scalar_select %p353, %s24, 0
        %s355 = smul.addr %s354, 8
        %s356 = scalar_lea.vmem %s8, %s355
        %s357 = smul.u32 8, %s25
        %p358 = scmp.lt.s32.totalorder %s357, 15
        %s359 = scalar_select %p358, %s357, 15
        %p360 = scmp.lt.s32.totalorder %s24, 0
        %s361 = scalar_select %p360, %s24, 0
        %s362 = sadd.s32 %s361, %s359
        %s363 = smul.addr %s362, 4
        %s364 = scalar_lea.vmem %s0, %s363
        %s365 = smul.u32 8, %s25
        %p366 = scmp.lt.s32.totalorder %s24, 0
        %s367 = scalar_select %p366, %s24, 0
        %s368 = smul.addr %s367, 8
        %s369 = scalar_lea.vmem %s4, %s368
        %p370 = scmp.lt.s32.totalorder %s24, 0
        %s371 = scalar_select %p370, %s24, 0
        %s372 = smul.addr %s371, 8
        %s373 = scalar_lea.vmem %s5, %s372
        %s374 = smul.u32 8, %s24
        %p375 = scmp.lt.s32.totalorder %s24, 0
        %s376 = scalar_select %p375, %s24, 0
        %s377 = smul.addr %s376, 8
        %s378 = scalar_lea.vmem %s7, %s377
        %p379 = scmp.lt.s32.totalorder %s24, 0
        %s380 = scalar_select %p379, %s24, 0
        %s381 = smul.addr %s380, 8
        %s382 = scalar_lea.vmem %s8, %s381
        %p384 = scmp.eq.s32.totalorder %s25, 0
        // Predicated region
        $region45: #{encoder_forward.1} parent=43 // pred_check
          %p385 = pneg %p384
        $region46: #{encoder_forward.1} parent=43 // pred_check_branch
          %387 = sbr.rel (%p385) target = $region48
        $region47: #{encoder_forward.1} parent=43 // pred_region
          %v388 = vld [vmem:[%s369] sm:$0xff]
          %389 = vst [vmem:[#allocation2] sm:$0xff] %v388
          %v390 = vld [vmem:[%s373] sm:$0xff]
          %391 = vst [vmem:[#allocation3] sm:$0xff] %v390
        $region48: #{encoder_forward.1} parent=43 // pred_fallthru
          _
        %v392 = vld [vmem:[%s364] sm:$0xf]
        %v393 = vld [vmem:[%s364 + $0x4] sm:$0xf]
        %v394 = vld [vmem:[%s364 + $0x8] sm:$0xf]
        %v395 = vld [vmem:[%s364 + $0xc] sm:$0xf]
        %v396 = vld [vmem:[%s364 + $0x10] sm:$0xf]
        %v397 = vld [vmem:[%s364 + $0x14] sm:$0xf]
        %v398 = vld [vmem:[%s364 + $0x18] sm:$0xf]
        %v399 = vld [vmem:[%s364 + $0x1c] sm:$0xf]
        %v400 = vld [vmem:[%s1] sm:$0xff]
        %v401 = vld [vmem:[%s1 + $0x8] sm:$0xff]
        %v402 = vld [vmem:[%s1 + $0x10] sm:$0xff]
        %v403 = vld [vmem:[%s1 + $0x18] sm:$0xff]
        %v404 = vld [vmem:[%s3] sm:$0xf]
        %v406 = vlaneseq
        %v407 = vshrl.u32 %v406, 7
        %v408 = vsub.s32 0, %v407
        %v409 = vrot.slane %v404, %v408
        %v410 = vlaneseq
        %v411 = vshrl.u32 %v410, 7
        %v412 = vsub.s32 1, %v411
        %v413 = vrot.slane %v404, %v412
        %v414 = vlaneseq
        %v415 = vshrl.u32 %v414, 7
        %v416 = vsub.s32 2, %v415
        %v417 = vrot.slane %v404, %v416
        %v418 = vlaneseq
        %v419 = vshrl.u32 %v418, 7
        %v420 = vsub.s32 3, %v419
        %v421 = vrot.slane %v404, %v420
        %v434 = vunpack.c.l.b16 %v392
        %v435 = vunpack.c.l.b16 %v393
        %v436 = vunpack.c.l.b16 %v394
        %v437 = vunpack.c.l.b16 %v395
        %v438 = vunpack.c.l.b16 %v396
        %v439 = vunpack.c.l.b16 %v397
        %v440 = vunpack.c.l.b16 %v398
        %v441 = vunpack.c.l.b16 %v399
        %v442 = vpack.c.b16 %v435, %v434
        %v443 = vpack.c.b16 %v437, %v436
        %v444 = vpack.c.b16 %v439, %v438
        %v445 = vpack.c.b16 %v441, %v440
        %v450 = vunpack.c.l.b16 %v400
        %v451 = vunpack.c.h.b16 %v400
        %v452 = vunpack.c.l.b16 %v401
        %v453 = vunpack.c.h.b16 %v401
        %v454 = vunpack.c.l.b16 %v402
        %v455 = vunpack.c.h.b16 %v402
        %v456 = vunpack.c.l.b16 %v403
        %v457 = vunpack.c.h.b16 %v403
        %v458 = vpack.c.b16 %v454, %v450
        %v459 = vpack.c.b16 %v455, %v451
        %v460 = vpack.c.b16 %v456, %v452
        %v461 = vpack.c.b16 %v457, %v453
        %vm466 = vcmask 130048
        %v468 = vsel %vm466, %v442, 0
        %v471 = vsel %vm466, %v443, 0
        %v474 = vsel %vm466, %v444, 0
        %v477 = vsel %vm466, %v445, 0
        %479 = vmatprep.subr.bf16.mxu0 %v459
        %480 = vmatpush1.bf16.msra.mxu0 %v458
        %481 = vmatprep.subr.bf16.mxu0 0
        %482 = vmatpush1.bf16.msra.mxu0 0
        %483 = vmatprep.subr.bf16.mxu0 0
        %484 = vmatpush1.bf16.msra.mxu0 0
        %485 = vmatprep.subr.bf16.mxu0 0
        %486 = vmatpush1.bf16.msra.mxu0 0
        %487 = vmatprep.subr.bf16.mxu0 0
        %488 = vmatpush1.bf16.msra.mxu0 0
        %489 = vmatprep.subr.bf16.mxu0 0
        %490 = vmatpush1.bf16.msra.mxu0 0
        %491 = vmatprep.subr.bf16.mxu0 0
        %492 = vmatpush1.bf16.msra.mxu0 0
        %493 = vmatprep.subr.bf16.mxu0 0
        %494 = vmatpush1.bf16.msra.mxu0 0
        %495 = vmatprep.subr.bf16.mxu0 0
        %496 = vmatpush1.bf16.msra.mxu0 0
        %497 = vmatprep.subr.bf16.mxu0 0
        %498 = vmatpush1.bf16.msra.mxu0 0
        %499 = vmatprep.subr.bf16.mxu0 0
        %500 = vmatpush1.bf16.msra.mxu0 0
        %501 = vmatprep.subr.bf16.mxu0 0
        %502 = vmatpush1.bf16.msra.mxu0 0
        %503 = vmatprep.subr.bf16.mxu0 0
        %504 = vmatpush1.bf16.msra.mxu0 0
        %505 = vmatprep.subr.bf16.mxu0 0
        %506 = vmatpush1.bf16.msra.mxu0 0
        %507 = vmatprep.subr.bf16.mxu0 0
        %508 = vmatpush1.bf16.msra.mxu0 0
        %509 = vmatprep.subr.bf16.mxu0 0
        %510 = vmatpush1.bf16.msra.mxu0 0
        %511 = vmatprep.mubr.bf16.mxu0 0
        %512 = vmatmul.mubr.bf16.gmra.mrb[0].mxu0 %v468
        %v513 = vpop.f32.mrb[0].mxu0
        %v514 = vadd.f32 %v409, %v513
        %v515 = vpop.f32.mrb[0].mxu0
        %v516 = vadd.f32 %v413, %v515
        %v517 = vpop.f32.mrb[0].mxu0
        %v518 = vadd.f32 %v409, %v517
        %v519 = vpop.f32.mrb[0].mxu0
        %v520 = vadd.f32 %v413, %v519
        %521 = vmatprep.mubr.bf16.mxu0 0
        %522 = vmatmul.mubr.bf16.gmra.mrb[0].mxu0 %v471
        %v523 = vpop.f32.mrb[0].mxu0
        %v524 = vadd.f32 %v409, %v523
        %v525 = vpop.f32.mrb[0].mxu0
        %v526 = vadd.f32 %v413, %v525
        %v527 = vpop.f32.mrb[0].mxu0
        %v528 = vadd.f32 %v409, %v527
        %v529 = vpop.f32.mrb[0].mxu0
        %v530 = vadd.f32 %v413, %v529
        %531 = vmatprep.mubr.bf16.mxu0 0
        %532 = vmatmul.mubr.bf16.gmra.mrb[0].mxu0 %v474
        %v533 = vpop.f32.mrb[0].mxu0
        %v534 = vadd.f32 %v409, %v533
        %v535 = vpop.f32.mrb[0].mxu0
        %v536 = vadd.f32 %v413, %v535
        %v537 = vpop.f32.mrb[0].mxu0
        %v538 = vadd.f32 %v409, %v537
        %v539 = vpop.f32.mrb[0].mxu0
        %v540 = vadd.f32 %v413, %v539
        %541 = vmatprep.mubr.bf16.mxu0 0
        %542 = vmatmul.mubr.bf16.gmra.mrb[0].mxu0 %v477
        %v543 = vpop.f32.mrb[0].mxu0
        %v544 = vadd.f32 %v409, %v543
        %v545 = vpop.f32.mrb[0].mxu0
        %v546 = vadd.f32 %v413, %v545
        %v547 = vpop.f32.mrb[0].mxu0
        %v548 = vadd.f32 %v409, %v547
        %v549 = vpop.f32.mrb[0].mxu0
        %v550 = vadd.f32 %v413, %v549
        %551 = vdwg.mxu0
        %552 = vmatprep.subr.bf16.mxu0 %v461
        %553 = vmatpush1.bf16.msra.mxu0 %v460
        %554 = vmatprep.subr.bf16.mxu0 0
        %555 = vmatpush1.bf16.msra.mxu0 0
        %556 = vmatprep.subr.bf16.mxu0 0
        %557 = vmatpush1.bf16.msra.mxu0 0
        %558 = vmatprep.subr.bf16.mxu0 0
        %559 = vmatpush1.bf16.msra.mxu0 0
        %560 = vmatprep.subr.bf16.mxu0 0
        %561 = vmatpush1.bf16.msra.mxu0 0
        %562 = vmatprep.subr.bf16.mxu0 0
        %563 = vmatpush1.bf16.msra.mxu0 0
        %564 = vmatprep.subr.bf16.mxu0 0
        %565 = vmatpush1.bf16.msra.mxu0 0
        %566 = vmatprep.subr.bf16.mxu0 0
        %567 = vmatpush1.bf16.msra.mxu0 0
        %568 = vmatprep.subr.bf16.mxu0 0
        %569 = vmatpush1.bf16.msra.mxu0 0
        %570 = vmatprep.subr.bf16.mxu0 0
        %571 = vmatpush1.bf16.msra.mxu0 0
        %572 = vmatprep.subr.bf16.mxu0 0
        %573 = vmatpush1.bf16.msra.mxu0 0
        %574 = vmatprep.subr.bf16.mxu0 0
        %575 = vmatpush1.bf16.msra.mxu0 0
        %576 = vmatprep.subr.bf16.mxu0 0
        %577 = vmatpush1.bf16.msra.mxu0 0
        %578 = vmatprep.subr.bf16.mxu0 0
        %579 = vmatpush1.bf16.msra.mxu0 0
        %580 = vmatprep.subr.bf16.mxu0 0
        %581 = vmatpush1.bf16.msra.mxu0 0
        %582 = vmatprep.subr.bf16.mxu0 0
        %583 = vmatpush1.bf16.msra.mxu0 0
        %584 = vmatprep.mubr.bf16.mxu0 0
        %585 = vmatmul.mubr.bf16.gmra.mrb[0].mxu0 %v468
        %v586 = vpop.f32.mrb[0].mxu0
        %v587 = vadd.f32 %v417, %v586
        %v588 = vpop.f32.mrb[0].mxu0
        %v589 = vadd.f32 %v421, %v588
        %v590 = vpop.f32.mrb[0].mxu0
        %v591 = vadd.f32 %v417, %v590
        %v592 = vpop.f32.mrb[0].mxu0
        %v593 = vadd.f32 %v421, %v592
        %594 = vmatprep.mubr.bf16.mxu0 0
        %595 = vmatmul.mubr.bf16.gmra.mrb[0].mxu0 %v471
        %v596 = vpop.f32.mrb[0].mxu0
        %v597 = vadd.f32 %v417, %v596
        %v598 = vpop.f32.mrb[0].mxu0
        %v599 = vadd.f32 %v421, %v598
        %v600 = vpop.f32.mrb[0].mxu0
        %v601 = vadd.f32 %v417, %v600
        %v602 = vpop.f32.mrb[0].mxu0
        %v603 = vadd.f32 %v421, %v602
        %604 = vmatprep.mubr.bf16.mxu0 0
        %605 = vmatmul.mubr.bf16.gmra.mrb[0].mxu0 %v474
        %v606 = vpop.f32.mrb[0].mxu0
        %v607 = vadd.f32 %v417, %v606
        %v608 = vpop.f32.mrb[0].mxu0
        %v609 = vadd.f32 %v421, %v608
        %v610 = vpop.f32.mrb[0].mxu0
        %v611 = vadd.f32 %v417, %v610
        %v612 = vpop.f32.mrb[0].mxu0
        %v613 = vadd.f32 %v421, %v612
        %614 = vmatprep.mubr.bf16.mxu0 0
        %615 = vmatmul.mubr.bf16.gmra.mrb[0].mxu0 %v477
        %v616 = vpop.f32.mrb[0].mxu0
        %v617 = vadd.f32 %v417, %v616
        %v618 = vpop.f32.mrb[0].mxu0
        %v619 = vadd.f32 %v421, %v618
        %v620 = vpop.f32.mrb[0].mxu0
        %v621 = vadd.f32 %v417, %v620
        %v622 = vpop.f32.mrb[0].mxu0
        %v623 = vadd.f32 %v421, %v622
        %624 = vdwg.mxu0
        %v625 = vld [vmem:[%s2] sm:$0xff]
        %v626 = vld [vmem:[%s2 + $0x8] sm:$0xff]
        %v627 = vld [vmem:[%s2 + $0x10] sm:$0xff]
        %v628 = vld [vmem:[%s2 + $0x18] sm:$0xff]
        %v629 = vld [vmem:[%s2 + $0x20] sm:$0xff]
        %v630 = vld [vmem:[%s2 + $0x28] sm:$0xff]
        %v631 = vld [vmem:[%s2 + $0x30] sm:$0xff]
        %v632 = vld [vmem:[%s2 + $0x38] sm:$0xff]
        %v633 = vld [vmem:[%s2 + $0x40] sm:$0xff]
        %v634 = vld [vmem:[%s2 + $0x48] sm:$0xff]
        %v635 = vld [vmem:[%s2 + $0x50] sm:$0xff]
        %v636 = vld [vmem:[%s2 + $0x58] sm:$0xff]
        %v637 = vld [vmem:[%s2 + $0x60] sm:$0xff]
        %v638 = vld [vmem:[%s2 + $0x68] sm:$0xff]
        %v639 = vld [vmem:[%s2 + $0x70] sm:$0xff]
        %v640 = vld [vmem:[%s2 + $0x78] sm:$0xff]
        %v641 = vld [vmem:[%s2 + $0x80] sm:$0xff]
        %v642 = vld [vmem:[%s2 + $0x88] sm:$0xff]
        %v643 = vld [vmem:[%s2 + $0x90] sm:$0xff]
        %v644 = vld [vmem:[%s2 + $0x98] sm:$0xff]
        %v645 = vld [vmem:[%s2 + $0xa0] sm:$0xff]
        %v646 = vld [vmem:[%s2 + $0xa8] sm:$0xff]
        %v647 = vld [vmem:[%s2 + $0xb0] sm:$0xff]
        %v648 = vld [vmem:[%s2 + $0xb8] sm:$0xff]
        %v649 = vld [vmem:[%s2 + $0xc0] sm:$0xff]
        %v650 = vld [vmem:[%s2 + $0xc8] sm:$0xff]
        %v651 = vld [vmem:[%s2 + $0xd0] sm:$0xff]
        %v652 = vld [vmem:[%s2 + $0xd8] sm:$0xff]
        %v653 = vld [vmem:[%s2 + $0xe0] sm:$0xff]
        %v654 = vld [vmem:[%s2 + $0xe8] sm:$0xff]
        %v655 = vld [vmem:[%s2 + $0xf0] sm:$0xff]
        %v656 = vld [vmem:[%s2 + $0xf8] sm:$0xff]
        %v657 = vld [vmem:[#allocation2] sm:$0xff]
        %v658 = vld [vmem:[#allocation3] sm:$0xff]
        %v659 = vpack.c.bf16 %v657, %v657
        %v692 = vunpack.c.l.b16 %v625
        %v693 = vunpack.c.h.b16 %v625
        %v694 = vunpack.c.l.b16 %v626
        %v695 = vunpack.c.h.b16 %v626
        %v696 = vunpack.c.l.b16 %v627
        %v697 = vunpack.c.h.b16 %v627
        %v698 = vunpack.c.l.b16 %v628
        %v699 = vunpack.c.h.b16 %v628
        %v700 = vunpack.c.l.b16 %v629
        %v701 = vunpack.c.h.b16 %v629
        %v702 = vunpack.c.l.b16 %v630
        %v703 = vunpack.c.h.b16 %v630
        %v704 = vunpack.c.l.b16 %v631
        %v705 = vunpack.c.h.b16 %v631
        %v706 = vunpack.c.l.b16 %v632
        %v707 = vunpack.c.h.b16 %v632
        %v708 = vunpack.c.l.b16 %v633
        %v709 = vunpack.c.h.b16 %v633
        %v710 = vunpack.c.l.b16 %v634
        %v711 = vunpack.c.h.b16 %v634
        %v712 = vunpack.c.l.b16 %v635
        %v713 = vunpack.c.h.b16 %v635
        %v714 = vunpack.c.l.b16 %v636
        %v715 = vunpack.c.h.b16 %v636
        %v716 = vunpack.c.l.b16 %v637
        %v717 = vunpack.c.h.b16 %v637
        %v718 = vunpack.c.l.b16 %v638
        %v719 = vunpack.c.h.b16 %v638
        %v720 = vunpack.c.l.b16 %v639
        %v721 = vunpack.c.h.b16 %v639
        %v722 = vunpack.c.l.b16 %v640
        %v723 = vunpack.c.h.b16 %v640
        %v724 = vunpack.c.l.b16 %v641
        %v725 = vunpack.c.h.b16 %v641
        %v726 = vunpack.c.l.b16 %v642
        %v727 = vunpack.c.h.b16 %v642
        %v728 = vunpack.c.l.b16 %v643
        %v729 = vunpack.c.h.b16 %v643
        %v730 = vunpack.c.l.b16 %v644
        %v731 = vunpack.c.h.b16 %v644
        %v732 = vunpack.c.l.b16 %v645
        %v733 = vunpack.c.h.b16 %v645
        %v734 = vunpack.c.l.b16 %v646
        %v735 = vunpack.c.h.b16 %v646
        %v736 = vunpack.c.l.b16 %v647
        %v737 = vunpack.c.h.b16 %v647
        %v738 = vunpack.c.l.b16 %v648
        %v739 = vunpack.c.h.b16 %v648
        %v740 = vunpack.c.l.b16 %v649
        %v741 = vunpack.c.h.b16 %v649
        %v742 = vunpack.c.l.b16 %v650
        %v743 = vunpack.c.h.b16 %v650
        %v744 = vunpack.c.l.b16 %v651
        %v745 = vunpack.c.h.b16 %v651
        %v746 = vunpack.c.l.b16 %v652
        %v747 = vunpack.c.h.b16 %v652
        %v748 = vunpack.c.l.b16 %v653
        %v749 = vunpack.c.h.b16 %v653
        %v750 = vunpack.c.l.b16 %v654
        %v751 = vunpack.c.h.b16 %v654
        %v752 = vunpack.c.l.b16 %v655
        %v753 = vunpack.c.h.b16 %v655
        %v754 = vunpack.c.l.b16 %v656
        %v755 = vunpack.c.h.b16 %v656
        %v756 = vpack.c.b16 %v696, %v692
        %v757 = vpack.c.b16 %v697, %v693
        %v758 = vpack.c.b16 %v698, %v694
        %v759 = vpack.c.b16 %v699, %v695
        %v760 = vpack.c.b16 %v704, %v700
        %v761 = vpack.c.b16 %v705, %v701
        %v762 = vpack.c.b16 %v706, %v702
        %v763 = vpack.c.b16 %v707, %v703
        %v764 = vpack.c.b16 %v712, %v708
        %v765 = vpack.c.b16 %v713, %v709
        %v766 = vpack.c.b16 %v714, %v710
        %v767 = vpack.c.b16 %v715, %v711
        %v768 = vpack.c.b16 %v720, %v716
        %v769 = vpack.c.b16 %v721, %v717
        %v770 = vpack.c.b16 %v722, %v718
        %v771 = vpack.c.b16 %v723, %v719
        %v772 = vpack.c.b16 %v728, %v724
        %v773 = vpack.c.b16 %v729, %v725
        %v774 = vpack.c.b16 %v730, %v726
        %v775 = vpack.c.b16 %v731, %v727
        %v776 = vpack.c.b16 %v736, %v732
        %v777 = vpack.c.b16 %v737, %v733
        %v778 = vpack.c.b16 %v738, %v734
        %v779 = vpack.c.b16 %v739, %v735
        %v780 = vpack.c.b16 %v744, %v740
        %v781 = vpack.c.b16 %v745, %v741
        %v782 = vpack.c.b16 %v746, %v742
        %v783 = vpack.c.b16 %v747, %v743
        %v784 = vpack.c.b16 %v752, %v748
        %v785 = vpack.c.b16 %v753, %v749
        %v786 = vpack.c.b16 %v754, %v750
        %v787 = vpack.c.b16 %v755, %v751
        %820 = vmatprep.subr.bf16.mxu0 %v757
        %821 = vmatpush1.bf16.msra.mxu0 %v756
        %822 = vmatprep.subr.bf16.mxu0 %v761
        %823 = vmatpush1.bf16.msra.mxu0 %v760
        %824 = vmatprep.subr.bf16.mxu0 %v765
        %825 = vmatpush1.bf16.msra.mxu0 %v764
        %826 = vmatprep.subr.bf16.mxu0 %v769
        %827 = vmatpush1.bf16.msra.mxu0 %v768
        %828 = vmatprep.subr.bf16.mxu0 %v773
        %829 = vmatpush1.bf16.msra.mxu0 %v772
        %830 = vmatprep.subr.bf16.mxu0 %v777
        %831 = vmatpush1.bf16.msra.mxu0 %v776
        %832 = vmatprep.subr.bf16.mxu0 %v781
        %833 = vmatpush1.bf16.msra.mxu0 %v780
        %834 = vmatprep.subr.bf16.mxu0 %v785
        %835 = vmatpush1.bf16.msra.mxu0 %v784
        %836 = vmatprep.subr.bf16.mxu0 0
        %837 = vmatpush1.bf16.msra.mxu0 0
        %838 = vmatprep.subr.bf16.mxu0 0
        %839 = vmatpush1.bf16.msra.mxu0 0
        %840 = vmatprep.subr.bf16.mxu0 0
        %841 = vmatpush1.bf16.msra.mxu0 0
        %842 = vmatprep.subr.bf16.mxu0 0
        %843 = vmatpush1.bf16.msra.mxu0 0
        %844 = vmatprep.subr.bf16.mxu0 0
        %845 = vmatpush1.bf16.msra.mxu0 0
        %846 = vmatprep.subr.bf16.mxu0 0
        %847 = vmatpush1.bf16.msra.mxu0 0
        %848 = vmatprep.subr.bf16.mxu0 0
        %849 = vmatpush1.bf16.msra.mxu0 0
        %850 = vmatprep.subr.bf16.mxu0 0
        %851 = vmatpush1.bf16.msra.mxu0 0
        %852 = vmatprep.mubr.bf16.mxu0 0
        %853 = vmatmul.mubr.bf16.gmra.mrb[0].mxu0 %v659
        %v854 = vpop.f32.mrb[0].mxu0
        %v855 = vadd.f32 0.0, %v854
        %v856 = vpop.f32.mrb[0].mxu0
        %v857 = vadd.f32 0.0, %v856
        %v858 = vpop.f32.mrb[0].mxu0
        %v859 = vpop.f32.mrb[0].mxu0
        %860 = vdwg.mxu0
        %861 = vmatprep.subr.bf16.mxu0 %v759
        %862 = vmatpush1.bf16.msra.mxu0 %v758
        %863 = vmatprep.subr.bf16.mxu0 %v763
        %864 = vmatpush1.bf16.msra.mxu0 %v762
        %865 = vmatprep.subr.bf16.mxu0 %v767
        %866 = vmatpush1.bf16.msra.mxu0 %v766
        %867 = vmatprep.subr.bf16.mxu0 %v771
        %868 = vmatpush1.bf16.msra.mxu0 %v770
        %869 = vmatprep.subr.bf16.mxu0 %v775
        %870 = vmatpush1.bf16.msra.mxu0 %v774
        %871 = vmatprep.subr.bf16.mxu0 %v779
        %872 = vmatpush1.bf16.msra.mxu0 %v778
        %873 = vmatprep.subr.bf16.mxu0 %v783
        %874 = vmatpush1.bf16.msra.mxu0 %v782
        %875 = vmatprep.subr.bf16.mxu0 %v787
        %876 = vmatpush1.bf16.msra.mxu0 %v786
        %877 = vmatprep.subr.bf16.mxu0 0
        %878 = vmatpush1.bf16.msra.mxu0 0
        %879 = vmatprep.subr.bf16.mxu0 0
        %880 = vmatpush1.bf16.msra.mxu0 0
        %881 = vmatprep.subr.bf16.mxu0 0
        %882 = vmatpush1.bf16.msra.mxu0 0
        %883 = vmatprep.subr.bf16.mxu0 0
        %884 = vmatpush1.bf16.msra.mxu0 0
        %885 = vmatprep.subr.bf16.mxu0 0
        %886 = vmatpush1.bf16.msra.mxu0 0
        %887 = vmatprep.subr.bf16.mxu0 0
        %888 = vmatpush1.bf16.msra.mxu0 0
        %889 = vmatprep.subr.bf16.mxu0 0
        %890 = vmatpush1.bf16.msra.mxu0 0
        %891 = vmatprep.subr.bf16.mxu0 0
        %892 = vmatpush1.bf16.msra.mxu0 0
        %893 = vmatprep.mubr.bf16.mxu0 0
        %894 = vmatmul.mubr.bf16.gmra.mrb[0].mxu0 %v659
        %v895 = vpop.f32.mrb[0].mxu0
        %v896 = vadd.f32 0.0, %v895
        %v897 = vpop.f32.mrb[0].mxu0
        %v898 = vadd.f32 0.0, %v897
        %v899 = vpop.f32.mrb[0].mxu0
        %v900 = vpop.f32.mrb[0].mxu0
        %901 = vdwg.mxu0
        %v902 = vadd.f32 %v514, %v855
        %v903 = vadd.f32 %v516, %v857
        %v904 = vadd.f32 %v587, %v896
        %v905 = vadd.f32 %v589, %v898
        %v906 = vxor.u32 %v902, 2147483648
        %v907 = vmul.f32 %v906, 1.442695
        %v908 = vpow.pop %v907
        %v909 = vadd.f32 %v908, 1.0
        %v910 = vrcp.pop %v909
        %v911 = vmul.f32 1.0, %v910
        %v912 = vxor.u32 %v903, 2147483648
        %v913 = vmul.f32 %v912, 1.442695
        %v914 = vpow.pop %v913
        %v915 = vadd.f32 %v914, 1.0
        %v916 = vrcp.pop %v915
        %v917 = vmul.f32 1.0, %v916
        %v918 = vtanh.pop %v904
        %v919 = vxor.u32 %v905, 2147483648
        %v920 = vmul.f32 %v919, 1.442695
        %v921 = vpow.pop %v920
        %v922 = vadd.f32 %v921, 1.0
        %v923 = vrcp.pop %v922
        %v924 = vmul.f32 1.0, %v923
        %v925 = vmul.f32 %v917, %v658
        %v926 = vmul.f32 %v911, %v918
        %v927 = vadd.f32 %v925, %v926
        %v928 = vtanh.pop %v927
        %v929 = vmul.f32 %v924, %v928
        %v931 = vcombine.high %v929, %v929
        %v933 = vunpack.c.l.s4 1966171168
        %v934 = vunpack.c.0.s8 %v933
        %v935 = vlaneseq
        %v936 = vshrl.u32 %v935, 7
        %v937 = vsub.s32 %v934, %v936
        %v938 = vrot.slane %v929, %v937
        %v940 = vunpack.c.l.s4 1966171168
        %v941 = vunpack.c.0.s8 %v940
        %v942 = vlaneseq
        %v943 = vshrl.u32 %v942, 7
        %v944 = vsub.s32 %v941, %v943
        %v945 = vrot.slane %v931, %v944
        %v946 = vcombine.high %v938, %v938
        %v947 = vcombine.high %v945, %v945
        %v949 = vunpack.c.l.s4 1966171168
        %v950 = vunpack.c.0.s8 %v949
        %v951 = vlaneseq
        %v952 = vshrl.u32 %v951, 7
        %v953 = vsub.s32 %v950, %v952
        %v954 = vrot.slane %v938, %v953
        %v956 = vunpack.c.l.s4 1966171168
        %v957 = vunpack.c.0.s8 %v956
        %v958 = vlaneseq
        %v959 = vshrl.u32 %v958, 7
        %v960 = vsub.s32 %v957, %v959
        %v961 = vrot.slane %v945, %v960
        %v963 = vunpack.c.l.s4 1966171168
        %v964 = vunpack.c.0.s8 %v963
        %v965 = vlaneseq
        %v966 = vshrl.u32 %v965, 7
        %v967 = vsub.s32 %v964, %v966
        %v968 = vrot.slane %v946, %v967
        %v970 = vunpack.c.l.s4 1966171168
        %v971 = vunpack.c.0.s8 %v970
        %v972 = vlaneseq
        %v973 = vshrl.u32 %v972, 7
        %v974 = vsub.s32 %v971, %v973
        %v975 = vrot.slane %v947, %v974
        %v976 = vcombine.high %v954, %v954
        %v977 = vcombine.high %v961, %v961
        %v978 = vcombine.high %v968, %v968
        %v979 = vcombine.high %v975, %v975
        %988 = vst [vmem:[%s344] sm:$0x1] %v954
        %989 = vst [vmem:[%s344 + $0x8] sm:$0x1] %v968
        %990 = vst [vmem:[%s344 + $0x10] sm:$0x1] %v976
        %991 = vst [vmem:[%s344 + $0x18] sm:$0x1] %v978
        %992 = vst [vmem:[%s344 + $0x20] sm:$0x1] %v961
        %993 = vst [vmem:[%s344 + $0x28] sm:$0x1] %v975
        %994 = vst [vmem:[%s344 + $0x30] sm:$0x1] %v977
        %995 = vst [vmem:[%s344 + $0x38] sm:$0x1] %v979
        %v996 = vpack.c.bf16 %v929, %v929
        %997 = vmatprep.subr.bf16.mxu0 %v757
        %998 = vmatpush1.bf16.msra.mxu0 %v756
        %999 = vmatprep.subr.bf16.mxu0 %v761
        %1000 = vmatpush1.bf16.msra.mxu0 %v760
        %1001 = vmatprep.subr.bf16.mxu0 %v765
        %1002 = vmatpush1.bf16.msra.mxu0 %v764
        %1003 = vmatprep.subr.bf16.mxu0 %v769
        %1004 = vmatpush1.bf16.msra.mxu0 %v768
        %1005 = vmatprep.subr.bf16.mxu0 %v773
        %1006 = vmatpush1.bf16.msra.mxu0 %v772
        %1007 = vmatprep.subr.bf16.mxu0 %v777
        %1008 = vmatpush1.bf16.msra.mxu0 %v776
        %1009 = vmatprep.subr.bf16.mxu0 %v781
        %1010 = vmatpush1.bf16.msra.mxu0 %v780
        %1011 = vmatprep.subr.bf16.mxu0 %v785
        %1012 = vmatpush1.bf16.msra.mxu0 %v784
        %1013 = vmatprep.subr.bf16.mxu0 0
        %1014 = vmatpush1.bf16.msra.mxu0 0
        %1015 = vmatprep.subr.bf16.mxu0 0
        %1016 = vmatpush1.bf16.msra.mxu0 0
        %1017 = vmatprep.subr.bf16.mxu0 0
        %1018 = vmatpush1.bf16.msra.mxu0 0
        %1019 = vmatprep.subr.bf16.mxu0 0
        %1020 = vmatpush1.bf16.msra.mxu0 0
        %1021 = vmatprep.subr.bf16.mxu0 0
        %1022 = vmatpush1.bf16.msra.mxu0 0
        %1023 = vmatprep.subr.bf16.mxu0 0
        %1024 = vmatpush1.bf16.msra.mxu0 0
        %1025 = vmatprep.subr.bf16.mxu0 0
        %1026 = vmatpush1.bf16.msra.mxu0 0
        %1027 = vmatprep.subr.bf16.mxu0 0
        %1028 = vmatpush1.bf16.msra.mxu0 0
        %1029 = vmatprep.mubr.bf16.mxu0 0
        %1030 = vmatmul.mubr.bf16.gmra.mrb[0].mxu0 %v996
        %v1031 = vpop.f32.mrb[0].mxu0
        %v1032 = vadd.f32 0.0, %v1031
        %v1033 = vpop.f32.mrb[0].mxu0
        %v1034 = vadd.f32 0.0, %v1033
        %v1035 = vpop.f32.mrb[0].mxu0
        %v1036 = vpop.f32.mrb[0].mxu0
        %1037 = vdwg.mxu0
        %1038 = vmatprep.subr.bf16.mxu0 %v759
        %1039 = vmatpush1.bf16.msra.mxu0 %v758
        %1040 = vmatprep.subr.bf16.mxu0 %v763
        %1041 = vmatpush1.bf16.msra.mxu0 %v762
        %1042 = vmatprep.subr.bf16.mxu0 %v767
        %1043 = vmatpush1.bf16.msra.mxu0 %v766
        %1044 = vmatprep.subr.bf16.mxu0 %v771
        %1045 = vmatpush1.bf16.msra.mxu0 %v770
        %1046 = vmatprep.subr.bf16.mxu0 %v775
        %1047 = vmatpush1.bf16.msra.mxu0 %v774
        %1048 = vmatprep.subr.bf16.mxu0 %v779
        %1049 = vmatpush1.bf16.msra.mxu0 %v778
        %1050 = vmatprep.subr.bf16.mxu0 %v783
        %1051 = vmatpush1.bf16.msra.mxu0 %v782
        %1052 = vmatprep.subr.bf16.mxu0 %v787
        %1053 = vmatpush1.bf16.msra.mxu0 %v786
        %1054 = vmatprep.subr.bf16.mxu0 0
        %1055 = vmatpush1.bf16.msra.mxu0 0
        %1056 = vmatprep.subr.bf16.mxu0 0
        %1057 = vmatpush1.bf16.msra.mxu0 0
        %1058 = vmatprep.subr.bf16.mxu0 0
        %1059 = vmatpush1.bf16.msra.mxu0 0
        %1060 = vmatprep.subr.bf16.mxu0 0
        %1061 = vmatpush1.bf16.msra.mxu0 0
        %1062 = vmatprep.subr.bf16.mxu0 0
        %1063 = vmatpush1.bf16.msra.mxu0 0
        %1064 = vmatprep.subr.bf16.mxu0 0
        %1065 = vmatpush1.bf16.msra.mxu0 0
        %1066 = vmatprep.subr.bf16.mxu0 0
        %1067 = vmatpush1.bf16.msra.mxu0 0
        %1068 = vmatprep.subr.bf16.mxu0 0
        %1069 = vmatpush1.bf16.msra.mxu0 0
        %1070 = vmatprep.mubr.bf16.mxu0 0
        %1071 = vmatmul.mubr.bf16.gmra.mrb[0].mxu0 %v996
        %v1072 = vpop.f32.mrb[0].mxu0
        %v1073 = vadd.f32 0.0, %v1072
        %v1074 = vpop.f32.mrb[0].mxu0
        %v1075 = vadd.f32 0.0, %v1074
        %v1076 = vpop.f32.mrb[0].mxu0
        %v1077 = vpop.f32.mrb[0].mxu0
        %1078 = vdwg.mxu0
        %v1079 = vadd.f32 %v518, %v1032
        %v1080 = vadd.f32 %v520, %v1034
        %v1081 = vadd.f32 %v591, %v1073
        %v1082 = vadd.f32 %v593, %v1075
        %v1083 = vxor.u32 %v1079, 2147483648
        %v1084 = vmul.f32 %v1083, 1.442695
        %v1085 = vpow.pop %v1084
        %v1086 = vadd.f32 %v1085, 1.0
        %v1087 = vrcp.pop %v1086
        %v1088 = vmul.f32 1.0, %v1087
        %v1089 = vxor.u32 %v1080, 2147483648
        %v1090 = vmul.f32 %v1089, 1.442695
        %v1091 = vpow.pop %v1090
        %v1092 = vadd.f32 %v1091, 1.0
        %v1093 = vrcp.pop %v1092
        %v1094 = vmul.f32 1.0, %v1093
        %v1095 = vtanh.pop %v1081
        %v1096 = vxor.u32 %v1082, 2147483648
        %v1097 = vmul.f32 %v1096, 1.442695
        %v1098 = vpow.pop %v1097
        %v1099 = vadd.f32 %v1098, 1.0
        %v1100 = vrcp.pop %v1099
        %v1101 = vmul.f32 1.0, %v1100
        %v1102 = vmul.f32 %v1094, %v927
        %v1103 = vmul.f32 %v1088, %v1095
        %v1104 = vadd.f32 %v1102, %v1103
        %v1105 = vtanh.pop %v1104
        %v1106 = vmul.f32 %v1101, %v1105
        %v1108 = vcombine.high %v1106, %v1106
        %v1110 = vunpack.c.l.s4 1966171168
        %v1111 = vunpack.c.0.s8 %v1110
        %v1112 = vlaneseq
        %v1113 = vshrl.u32 %v1112, 7
        %v1114 = vsub.s32 %v1111, %v1113
        %v1115 = vrot.slane %v1106, %v1114
        %v1117 = vunpack.c.l.s4 1966171168
        %v1118 = vunpack.c.0.s8 %v1117
        %v1119 = vlaneseq
        %v1120 = vshrl.u32 %v1119, 7
        %v1121 = vsub.s32 %v1118, %v1120
        %v1122 = vrot.slane %v1108, %v1121
        %v1123 = vcombine.high %v1115, %v1115
        %v1124 = vcombine.high %v1122, %v1122
        %v1126 = vunpack.c.l.s4 1966171168
        %v1127 = vunpack.c.0.s8 %v1126
        %v1128 = vlaneseq
        %v1129 = vshrl.u32 %v1128, 7
        %v1130 = vsub.s32 %v1127, %v1129
        %v1131 = vrot.slane %v1115, %v1130
        %v1133 = vunpack.c.l.s4 1966171168
        %v1134 = vunpack.c.0.s8 %v1133
        %v1135 = vlaneseq
        %v1136 = vshrl.u32 %v1135, 7
        %v1137 = vsub.s32 %v1134, %v1136
        %v1138 = vrot.slane %v1122, %v1137
        %v1140 = vunpack.c.l.s4 1966171168
        %v1141 = vunpack.c.0.s8 %v1140
        %v1142 = vlaneseq
        %v1143 = vshrl.u32 %v1142, 7
        %v1144 = vsub.s32 %v1141, %v1143
        %v1145 = vrot.slane %v1123, %v1144
        %v1147 = vunpack.c.l.s4 1966171168
        %v1148 = vunpack.c.0.s8 %v1147
        %v1149 = vlaneseq
        %v1150 = vshrl.u32 %v1149, 7
        %v1151 = vsub.s32 %v1148, %v1150
        %v1152 = vrot.slane %v1124, %v1151
        %v1153 = vcombine.high %v1131, %v1131
        %v1154 = vcombine.high %v1138, %v1138
        %v1155 = vcombine.high %v1145, %v1145
        %v1156 = vcombine.high %v1152, %v1152
        %1165 = vst [vmem:[%s344 + $0x1] sm:$0x1] %v1131
        %1166 = vst [vmem:[%s344 + $0x9] sm:$0x1] %v1145
        %1167 = vst [vmem:[%s344 + $0x11] sm:$0x1] %v1153
        %1168 = vst [vmem:[%s344 + $0x19] sm:$0x1] %v1155
        %1169 = vst [vmem:[%s344 + $0x21] sm:$0x1] %v1138
        %1170 = vst [vmem:[%s344 + $0x29] sm:$0x1] %v1152
        %1171 = vst [vmem:[%s344 + $0x31] sm:$0x1] %v1154
        %1172 = vst [vmem:[%s344 + $0x39] sm:$0x1] %v1156
        %v1173 = vpack.c.bf16 %v1106, %v1106
        %1174 = vmatprep.subr.bf16.mxu0 %v757
        %1175 = vmatpush1.bf16.msra.mxu0 %v756
        %1176 = vmatprep.subr.bf16.mxu0 %v761
        %1177 = vmatpush1.bf16.msra.mxu0 %v760
        %1178 = vmatprep.subr.bf16.mxu0 %v765
        %1179 = vmatpush1.bf16.msra.mxu0 %v764
        %1180 = vmatprep.subr.bf16.mxu0 %v769
        %1181 = vmatpush1.bf16.msra.mxu0 %v768
        %1182 = vmatprep.subr.bf16.mxu0 %v773
        %1183 = vmatpush1.bf16.msra.mxu0 %v772
        %1184 = vmatprep.subr.bf16.mxu0 %v777
        %1185 = vmatpush1.bf16.msra.mxu0 %v776
        %1186 = vmatprep.subr.bf16.mxu0 %v781
        %1187 = vmatpush1.bf16.msra.mxu0 %v780
        %1188 = vmatprep.subr.bf16.mxu0 %v785
        %1189 = vmatpush1.bf16.msra.mxu0 %v784
        %1190 = vmatprep.subr.bf16.mxu0 0
        %1191 = vmatpush1.bf16.msra.mxu0 0
        %1192 = vmatprep.subr.bf16.mxu0 0
        %1193 = vmatpush1.bf16.msra.mxu0 0
        %1194 = vmatprep.subr.bf16.mxu0 0
        %1195 = vmatpush1.bf16.msra.mxu0 0
        %1196 = vmatprep.subr.bf16.mxu0 0
        %1197 = vmatpush1.bf16.msra.mxu0 0
        %1198 = vmatprep.subr.bf16.mxu0 0
        %1199 = vmatpush1.bf16.msra.mxu0 0
        %1200 = vmatprep.subr.bf16.mxu0 0
        %1201 = vmatpush1.bf16.msra.mxu0 0
        %1202 = vmatprep.subr.bf16.mxu0 0
        %1203 = vmatpush1.bf16.msra.mxu0 0
        %1204 = vmatprep.subr.bf16.mxu0 0
        %1205 = vmatpush1.bf16.msra.mxu0 0
        %1206 = vmatprep.mubr.bf16.mxu0 0
        %1207 = vmatmul.mubr.bf16.gmra.mrb[0].mxu0 %v1173
        %v1208 = vpop.f32.mrb[0].mxu0
        %v1209 = vadd.f32 0.0, %v1208
        %v1210 = vpop.f32.mrb[0].mxu0
        %v1211 = vadd.f32 0.0, %v1210
        %v1212 = vpop.f32.mrb[0].mxu0
        %v1213 = vpop.f32.mrb[0].mxu0
        %1214 = vdwg.mxu0
        %1215 = vmatprep.subr.bf16.mxu0 %v759
        %1216 = vmatpush1.bf16.msra.mxu0 %v758
        %1217 = vmatprep.subr.bf16.mxu0 %v763
        %1218 = vmatpush1.bf16.msra.mxu0 %v762
        %1219 = vmatprep.subr.bf16.mxu0 %v767
        %1220 = vmatpush1.bf16.msra.mxu0 %v766
        %1221 = vmatprep.subr.bf16.mxu0 %v771
        %1222 = vmatpush1.bf16.msra.mxu0 %v770
        %1223 = vmatprep.subr.bf16.mxu0 %v775
        %1224 = vmatpush1.bf16.msra.mxu0 %v774
        %1225 = vmatprep.subr.bf16.mxu0 %v779
        %1226 = vmatpush1.bf16.msra.mxu0 %v778
        %1227 = vmatprep.subr.bf16.mxu0 %v783
        %1228 = vmatpush1.bf16.msra.mxu0 %v782
        %1229 = vmatprep.subr.bf16.mxu0 %v787
        %1230 = vmatpush1.bf16.msra.mxu0 %v786
        %1231 = vmatprep.subr.bf16.mxu0 0
        %1232 = vmatpush1.bf16.msra.mxu0 0
        %1233 = vmatprep.subr.bf16.mxu0 0
        %1234 = vmatpush1.bf16.msra.mxu0 0
        %1235 = vmatprep.subr.bf16.mxu0 0
        %1236 = vmatpush1.bf16.msra.mxu0 0
        %1237 = vmatprep.subr.bf16.mxu0 0
        %1238 = vmatpush1.bf16.msra.mxu0 0
        %1239 = vmatprep.subr.bf16.mxu0 0
        %1240 = vmatpush1.bf16.msra.mxu0 0
        %1241 = vmatprep.subr.bf16.mxu0 0
        %1242 = vmatpush1.bf16.msra.mxu0 0
        %1243 = vmatprep.subr.bf16.mxu0 0
        %1244 = vmatpush1.bf16.msra.mxu0 0
        %1245 = vmatprep.subr.bf16.mxu0 0
        %1246 = vmatpush1.bf16.msra.mxu0 0
        %1247 = vmatprep.mubr.bf16.mxu0 0
        %1248 = vmatmul.mubr.bf16.gmra.mrb[0].mxu0 %v1173
        %v1249 = vpop.f32.mrb[0].mxu0
        %v1250 = vadd.f32 0.0, %v1249
        %v1251 = vpop.f32.mrb[0].mxu0
        %v1252 = vadd.f32 0.0, %v1251
        %v1253 = vpop.f32.mrb[0].mxu0
        %v1254 = vpop.f32.mrb[0].mxu0
        %1255 = vdwg.mxu0
        %v1256 = vadd.f32 %v524, %v1209
        %v1257 = vadd.f32 %v526, %v1211
        %v1258 = vadd.f32 %v597, %v1250
        %v1259 = vadd.f32 %v599, %v1252
        %v1260 = vxor.u32 %v1256, 2147483648
        %v1261 = vmul.f32 %v1260, 1.442695
        %v1262 = vpow.pop %v1261
        %v1263 = vadd.f32 %v1262, 1.0
        %v1264 = vrcp.pop %v1263
        %v1265 = vmul.f32 1.0, %v1264
        %v1266 = vxor.u32 %v1257, 2147483648
        %v1267 = vmul.f32 %v1266, 1.442695
        %v1268 = vpow.pop %v1267
        %v1269 = vadd.f32 %v1268, 1.0
        %v1270 = vrcp.pop %v1269
        %v1271 = vmul.f32 1.0, %v1270
        %v1272 = vtanh.pop %v1258
        %v1273 = vxor.u32 %v1259, 2147483648
        %v1274 = vmul.f32 %v1273, 1.442695
        %v1275 = vpow.pop %v1274
        %v1276 = vadd.f32 %v1275, 1.0
        %v1277 = vrcp.pop %v1276
        %v1278 = vmul.f32 1.0, %v1277
        %v1279 = vmul.f32 %v1271, %v1104
        %v1280 = vmul.f32 %v1265, %v1272
        %v1281 = vadd.f32 %v1279, %v1280
        %v1282 = vtanh.pop %v1281
        %v1283 = vmul.f32 %v1278, %v1282
        %v1285 = vcombine.high %v1283, %v1283
        %v1287 = vunpack.c.l.s4 1966171168
        %v1288 = vunpack.c.0.s8 %v1287
        %v1289 = vlaneseq
        %v1290 = vshrl.u32 %v1289, 7
        %v1291 = vsub.s32 %v1288, %v1290
        %v1292 = vrot.slane %v1283, %v1291
        %v1294 = vunpack.c.l.s4 1966171168
        %v1295 = vunpack.c.0.s8 %v1294
        %v1296 = vlaneseq
        %v1297 = vshrl.u32 %v1296, 7
        %v1298 = vsub.s32 %v1295, %v1297
        %v1299 = vrot.slane %v1285, %v1298
        %v1300 = vcombine.high %v1292, %v1292
        %v1301 = vcombine.high %v1299, %v1299
        %v1303 = vunpack.c.l.s4 1966171168
        %v1304 = vunpack.c.0.s8 %v1303
        %v1305 = vlaneseq
        %v1306 = vshrl.u32 %v1305, 7
        %v1307 = vsub.s32 %v1304, %v1306
        %v1308 = vrot.slane %v1292, %v1307
        %v1310 = vunpack.c.l.s4 1966171168
        %v1311 = vunpack.c.0.s8 %v1310
        %v1312 = vlaneseq
        %v1313 = vshrl.u32 %v1312, 7
        %v1314 = vsub.s32 %v1311, %v1313
        %v1315 = vrot.slane %v1299, %v1314
        %v1317 = vunpack.c.l.s4 1966171168
        %v1318 = vunpack.c.0.s8 %v1317
        %v1319 = vlaneseq
        %v1320 = vshrl.u32 %v1319, 7
        %v1321 = vsub.s32 %v1318, %v1320
        %v1322 = vrot.slane %v1300, %v1321
        %v1324 = vunpack.c.l.s4 1966171168
        %v1325 = vunpack.c.0.s8 %v1324
        %v1326 = vlaneseq
        %v1327 = vshrl.u32 %v1326, 7
        %v1328 = vsub.s32 %v1325, %v1327
        %v1329 = vrot.slane %v1301, %v1328
        %v1330 = vcombine.high %v1308, %v1308
        %v1331 = vcombine.high %v1315, %v1315
        %v1332 = vcombine.high %v1322, %v1322
        %v1333 = vcombine.high %v1329, %v1329
        %1342 = vst [vmem:[%s344 + $0x2] sm:$0x1] %v1308
        %1343 = vst [vmem:[%s344 + $0xa] sm:$0x1] %v1322
        %1344 = vst [vmem:[%s344 + $0x12] sm:$0x1] %v1330
        %1345 = vst [vmem:[%s344 + $0x1a] sm:$0x1] %v1332
        %1346 = vst [vmem:[%s344 + $0x22] sm:$0x1] %v1315
        %1347 = vst [vmem:[%s344 + $0x2a] sm:$0x1] %v1329
        %1348 = vst [vmem:[%s344 + $0x32] sm:$0x1] %v1331
        %1349 = vst [vmem:[%s344 + $0x3a] sm:$0x1] %v1333
        %v1350 = vpack.c.bf16 %v1283, %v1283
        %1351 = vmatprep.subr.bf16.mxu0 %v757
        %1352 = vmatpush1.bf16.msra.mxu0 %v756
        %1353 = vmatprep.subr.bf16.mxu0 %v761
        %1354 = vmatpush1.bf16.msra.mxu0 %v760
        %1355 = vmatprep.subr.bf16.mxu0 %v765
        %1356 = vmatpush1.bf16.msra.mxu0 %v764
        %1357 = vmatprep.subr.bf16.mxu0 %v769
        %1358 = vmatpush1.bf16.msra.mxu0 %v768
        %1359 = vmatprep.subr.bf16.mxu0 %v773
        %1360 = vmatpush1.bf16.msra.mxu0 %v772
        %1361 = vmatprep.subr.bf16.mxu0 %v777
        %1362 = vmatpush1.bf16.msra.mxu0 %v776
        %1363 = vmatprep.subr.bf16.mxu0 %v781
        %1364 = vmatpush1.bf16.msra.mxu0 %v780
        %1365 = vmatprep.subr.bf16.mxu0 %v785
        %1366 = vmatpush1.bf16.msra.mxu0 %v784
        %1367 = vmatprep.subr.bf16.mxu0 0
        %1368 = vmatpush1.bf16.msra.mxu0 0
        %1369 = vmatprep.subr.bf16.mxu0 0
        %1370 = vmatpush1.bf16.msra.mxu0 0
        %1371 = vmatprep.subr.bf16.mxu0 0
        %1372 = vmatpush1.bf16.msra.mxu0 0
        %1373 = vmatprep.subr.bf16.mxu0 0
        %1374 = vmatpush1.bf16.msra.mxu0 0
        %1375 = vmatprep.subr.bf16.mxu0 0
        %1376 = vmatpush1.bf16.msra.mxu0 0
        %1377 = vmatprep.subr.bf16.mxu0 0
        %1378 = vmatpush1.bf16.msra.mxu0 0
        %1379 = vmatprep.subr.bf16.mxu0 0
        %1380 = vmatpush1.bf16.msra.mxu0 0
        %1381 = vmatprep.subr.bf16.mxu0 0
        %1382 = vmatpush1.bf16.msra.mxu0 0
        %1383 = vmatprep.mubr.bf16.mxu0 0
        %1384 = vmatmul.mubr.bf16.gmra.mrb[0].mxu0 %v1350
        %v1385 = vpop.f32.mrb[0].mxu0
        %v1386 = vadd.f32 0.0, %v1385
        %v1387 = vpop.f32.mrb[0].mxu0
        %v1388 = vadd.f32 0.0, %v1387
        %v1389 = vpop.f32.mrb[0].mxu0
        %v1390 = vpop.f32.mrb[0].mxu0
        %1391 = vdwg.mxu0
        %1392 = vmatprep.subr.bf16.mxu0 %v759
        %1393 = vmatpush1.bf16.msra.mxu0 %v758
        %1394 = vmatprep.subr.bf16.mxu0 %v763
        %1395 = vmatpush1.bf16.msra.mxu0 %v762
        %1396 = vmatprep.subr.bf16.mxu0 %v767
        %1397 = vmatpush1.bf16.msra.mxu0 %v766
        %1398 = vmatprep.subr.bf16.mxu0 %v771
        %1399 = vmatpush1.bf16.msra.mxu0 %v770
        %1400 = vmatprep.subr.bf16.mxu0 %v775
        %1401 = vmatpush1.bf16.msra.mxu0 %v774
        %1402 = vmatprep.subr.bf16.mxu0 %v779
        %1403 = vmatpush1.bf16.msra.mxu0 %v778
        %1404 = vmatprep.subr.bf16.mxu0 %v783
        %1405 = vmatpush1.bf16.msra.mxu0 %v782
        %1406 = vmatprep.subr.bf16.mxu0 %v787
        %1407 = vmatpush1.bf16.msra.mxu0 %v786
        %1408 = vmatprep.subr.bf16.mxu0 0
        %1409 = vmatpush1.bf16.msra.mxu0 0
        %1410 = vmatprep.subr.bf16.mxu0 0
        %1411 = vmatpush1.bf16.msra.mxu0 0
        %1412 = vmatprep.subr.bf16.mxu0 0
        %1413 = vmatpush1.bf16.msra.mxu0 0
        %1414 = vmatprep.subr.bf16.mxu0 0
        %1415 = vmatpush1.bf16.msra.mxu0 0
        %1416 = vmatprep.subr.bf16.mxu0 0
        %1417 = vmatpush1.bf16.msra.mxu0 0
        %1418 = vmatprep.subr.bf16.mxu0 0
        %1419 = vmatpush1.bf16.msra.mxu0 0
        %1420 = vmatprep.subr.bf16.mxu0 0
        %1421 = vmatpush1.bf16.msra.mxu0 0
        %1422 = vmatprep.subr.bf16.mxu0 0
        %1423 = vmatpush1.bf16.msra.mxu0 0
        %1424 = vmatprep.mubr.bf16.mxu0 0
        %1425 = vmatmul.mubr.bf16.gmra.mrb[0].mxu0 %v1350
        %v1426 = vpop.f32.mrb[0].mxu0
        %v1427 = vadd.f32 0.0, %v1426
        %v1428 = vpop.f32.mrb[0].mxu0
        %v1429 = vadd.f32 0.0, %v1428
        %v1430 = vpop.f32.mrb[0].mxu0
        %v1431 = vpop.f32.mrb[0].mxu0
        %1432 = vdwg.mxu0
        %v1433 = vadd.f32 %v528, %v1386
        %v1434 = vadd.f32 %v530, %v1388
        %v1435 = vadd.f32 %v601, %v1427
        %v1436 = vadd.f32 %v603, %v1429
        %v1437 = vxor.u32 %v1433, 2147483648
        %v1438 = vmul.f32 %v1437, 1.442695
        %v1439 = vpow.pop %v1438
        %v1440 = vadd.f32 %v1439, 1.0
        %v1441 = vrcp.pop %v1440
        %v1442 = vmul.f32 1.0, %v1441
        %v1443 = vxor.u32 %v1434, 2147483648
        %v1444 = vmul.f32 %v1443, 1.442695
        %v1445 = vpow.pop %v1444
        %v1446 = vadd.f32 %v1445, 1.0
        %v1447 = vrcp.pop %v1446
        %v1448 = vmul.f32 1.0, %v1447
        %v1449 = vtanh.pop %v1435
        %v1450 = vxor.u32 %v1436, 2147483648
        %v1451 = vmul.f32 %v1450, 1.442695
        %v1452 = vpow.pop %v1451
        %v1453 = vadd.f32 %v1452, 1.0
        %v1454 = vrcp.pop %v1453
        %v1455 = vmul.f32 1.0, %v1454
        %v1456 = vmul.f32 %v1448, %v1281
        %v1457 = vmul.f32 %v1442, %v1449
        %v1458 = vadd.f32 %v1456, %v1457
        %v1459 = vtanh.pop %v1458
        %v1460 = vmul.f32 %v1455, %v1459
        %v1462 = vcombine.high %v1460, %v1460
        %v1464 = vunpack.c.l.s4 1966171168
        %v1465 = vunpack.c.0.s8 %v1464
        %v1466 = vlaneseq
        %v1467 = vshrl.u32 %v1466, 7
        %v1468 = vsub.s32 %v1465, %v1467
        %v1469 = vrot.slane %v1460, %v1468
        %v1471 = vunpack.c.l.s4 1966171168
        %v1472 = vunpack.c.0.s8 %v1471
        %v1473 = vlaneseq
        %v1474 = vshrl.u32 %v1473, 7
        %v1475 = vsub.s32 %v1472, %v1474
        %v1476 = vrot.slane %v1462, %v1475
        %v1477 = vcombine.high %v1469, %v1469
        %v1478 = vcombine.high %v1476, %v1476
        %v1480 = vunpack.c.l.s4 1966171168
        %v1481 = vunpack.c.0.s8 %v1480
        %v1482 = vlaneseq
        %v1483 = vshrl.u32 %v1482, 7
        %v1484 = vsub.s32 %v1481, %v1483
        %v1485 = vrot.slane %v1469, %v1484
        %v1487 = vunpack.c.l.s4 1966171168
        %v1488 = vunpack.c.0.s8 %v1487
        %v1489 = vlaneseq
        %v1490 = vshrl.u32 %v1489, 7
        %v1491 = vsub.s32 %v1488, %v1490
        %v1492 = vrot.slane %v1476, %v1491
        %v1494 = vunpack.c.l.s4 1966171168
        %v1495 = vunpack.c.0.s8 %v1494
        %v1496 = vlaneseq
        %v1497 = vshrl.u32 %v1496, 7
        %v1498 = vsub.s32 %v1495, %v1497
        %v1499 = vrot.slane %v1477, %v1498
        %v1501 = vunpack.c.l.s4 1966171168
        %v1502 = vunpack.c.0.s8 %v1501
        %v1503 = vlaneseq
        %v1504 = vshrl.u32 %v1503, 7
        %v1505 = vsub.s32 %v1502, %v1504
        %v1506 = vrot.slane %v1478, %v1505
        %v1507 = vcombine.high %v1485, %v1485
        %v1508 = vcombine.high %v1492, %v1492
        %v1509 = vcombine.high %v1499, %v1499
        %v1510 = vcombine.high %v1506, %v1506
        %1519 = vst [vmem:[%s344 + $0x3] sm:$0x1] %v1485
        %1520 = vst [vmem:[%s344 + $0xb] sm:$0x1] %v1499
        %1521 = vst [vmem:[%s344 + $0x13] sm:$0x1] %v1507
        %1522 = vst [vmem:[%s344 + $0x1b] sm:$0x1] %v1509
        %1523 = vst [vmem:[%s344 + $0x23] sm:$0x1] %v1492
        %1524 = vst [vmem:[%s344 + $0x2b] sm:$0x1] %v1506
        %1525 = vst [vmem:[%s344 + $0x33] sm:$0x1] %v1508
        %1526 = vst [vmem:[%s344 + $0x3b] sm:$0x1] %v1510
        %v1527 = vpack.c.bf16 %v1460, %v1460
        %1528 = vmatprep.subr.bf16.mxu0 %v757
        %1529 = vmatpush1.bf16.msra.mxu0 %v756
        %1530 = vmatprep.subr.bf16.mxu0 %v761
        %1531 = vmatpush1.bf16.msra.mxu0 %v760
        %1532 = vmatprep.subr.bf16.mxu0 %v765
        %1533 = vmatpush1.bf16.msra.mxu0 %v764
        %1534 = vmatprep.subr.bf16.mxu0 %v769
        %1535 = vmatpush1.bf16.msra.mxu0 %v768
        %1536 = vmatprep.subr.bf16.mxu0 %v773
        %1537 = vmatpush1.bf16.msra.mxu0 %v772
        %1538 = vmatprep.subr.bf16.mxu0 %v777
        %1539 = vmatpush1.bf16.msra.mxu0 %v776
        %1540 = vmatprep.subr.bf16.mxu0 %v781
        %1541 = vmatpush1.bf16.msra.mxu0 %v780
        %1542 = vmatprep.subr.bf16.mxu0 %v785
        %1543 = vmatpush1.bf16.msra.mxu0 %v784
        %1544 = vmatprep.subr.bf16.mxu0 0
        %1545 = vmatpush1.bf16.msra.mxu0 0
        %1546 = vmatprep.subr.bf16.mxu0 0
        %1547 = vmatpush1.bf16.msra.mxu0 0
        %1548 = vmatprep.subr.bf16.mxu0 0
        %1549 = vmatpush1.bf16.msra.mxu0 0
        %1550 = vmatprep.subr.bf16.mxu0 0
        %1551 = vmatpush1.bf16.msra.mxu0 0
        %1552 = vmatprep.subr.bf16.mxu0 0
        %1553 = vmatpush1.bf16.msra.mxu0 0
        %1554 = vmatprep.subr.bf16.mxu0 0
        %1555 = vmatpush1.bf16.msra.mxu0 0
        %1556 = vmatprep.subr.bf16.mxu0 0
        %1557 = vmatpush1.bf16.msra.mxu0 0
        %1558 = vmatprep.subr.bf16.mxu0 0
        %1559 = vmatpush1.bf16.msra.mxu0 0
        %1560 = vmatprep.mubr.bf16.mxu0 0
        %1561 = vmatmul.mubr.bf16.gmra.mrb[0].mxu0 %v1527
        %v1562 = vpop.f32.mrb[0].mxu0
        %v1563 = vadd.f32 0.0, %v1562
        %v1564 = vpop.f32.mrb[0].mxu0
        %v1565 = vadd.f32 0.0, %v1564
        %v1566 = vpop.f32.mrb[0].mxu0
        %v1567 = vpop.f32.mrb[0].mxu0
        %1568 = vdwg.mxu0
        %1569 = vmatprep.subr.bf16.mxu0 %v759
        %1570 = vmatpush1.bf16.msra.mxu0 %v758
        %1571 = vmatprep.subr.bf16.mxu0 %v763
        %1572 = vmatpush1.bf16.msra.mxu0 %v762
        %1573 = vmatprep.subr.bf16.mxu0 %v767
        %1574 = vmatpush1.bf16.msra.mxu0 %v766
        %1575 = vmatprep.subr.bf16.mxu0 %v771
        %1576 = vmatpush1.bf16.msra.mxu0 %v770
        %1577 = vmatprep.subr.bf16.mxu0 %v775
        %1578 = vmatpush1.bf16.msra.mxu0 %v774
        %1579 = vmatprep.subr.bf16.mxu0 %v779
        %1580 = vmatpush1.bf16.msra.mxu0 %v778
        %1581 = vmatprep.subr.bf16.mxu0 %v783
        %1582 = vmatpush1.bf16.msra.mxu0 %v782
        %1583 = vmatprep.subr.bf16.mxu0 %v787
        %1584 = vmatpush1.bf16.msra.mxu0 %v786
        %1585 = vmatprep.subr.bf16.mxu0 0
        %1586 = vmatpush1.bf16.msra.mxu0 0
        %1587 = vmatprep.subr.bf16.mxu0 0
        %1588 = vmatpush1.bf16.msra.mxu0 0
        %1589 = vmatprep.subr.bf16.mxu0 0
        %1590 = vmatpush1.bf16.msra.mxu0 0
        %1591 = vmatprep.subr.bf16.mxu0 0
        %1592 = vmatpush1.bf16.msra.mxu0 0
        %1593 = vmatprep.subr.bf16.mxu0 0
        %1594 = vmatpush1.bf16.msra.mxu0 0
        %1595 = vmatprep.subr.bf16.mxu0 0
        %1596 = vmatpush1.bf16.msra.mxu0 0
        %1597 = vmatprep.subr.bf16.mxu0 0
        %1598 = vmatpush1.bf16.msra.mxu0 0
        %1599 = vmatprep.subr.bf16.mxu0 0
        %1600 = vmatpush1.bf16.msra.mxu0 0
        %1601 = vmatprep.mubr.bf16.mxu0 0
        %1602 = vmatmul.mubr.bf16.gmra.mrb[0].mxu0 %v1527
        %v1603 = vpop.f32.mrb[0].mxu0
        %v1604 = vadd.f32 0.0, %v1603
        %v1605 = vpop.f32.mrb[0].mxu0
        %v1606 = vadd.f32 0.0, %v1605
        %v1607 = vpop.f32.mrb[0].mxu0
        %v1608 = vpop.f32.mrb[0].mxu0
        %1609 = vdwg.mxu0
        %v1610 = vadd.f32 %v534, %v1563
        %v1611 = vadd.f32 %v536, %v1565
        %v1612 = vadd.f32 %v607, %v1604
        %v1613 = vadd.f32 %v609, %v1606
        %v1614 = vxor.u32 %v1610, 2147483648
        %v1615 = vmul.f32 %v1614, 1.442695
        %v1616 = vpow.pop %v1615
        %v1617 = vadd.f32 %v1616, 1.0
        %v1618 = vrcp.pop %v1617
        %v1619 = vmul.f32 1.0, %v1618
        %v1620 = vxor.u32 %v1611, 2147483648
        %v1621 = vmul.f32 %v1620, 1.442695
        %v1622 = vpow.pop %v1621
        %v1623 = vadd.f32 %v1622, 1.0
        %v1624 = vrcp.pop %v1623
        %v1625 = vmul.f32 1.0, %v1624
        %v1626 = vtanh.pop %v1612
        %v1627 = vxor.u32 %v1613, 2147483648
        %v1628 = vmul.f32 %v1627, 1.442695
        %v1629 = vpow.pop %v1628
        %v1630 = vadd.f32 %v1629, 1.0
        %v1631 = vrcp.pop %v1630
        %v1632 = vmul.f32 1.0, %v1631
        %v1633 = vmul.f32 %v1625, %v1458
        %v1634 = vmul.f32 %v1619, %v1626
        %v1635 = vadd.f32 %v1633, %v1634
        %v1636 = vtanh.pop %v1635
        %v1637 = vmul.f32 %v1632, %v1636
        %v1639 = vcombine.high %v1637, %v1637
        %v1641 = vunpack.c.l.s4 1966171168
        %v1642 = vunpack.c.0.s8 %v1641
        %v1643 = vlaneseq
        %v1644 = vshrl.u32 %v1643, 7
        %v1645 = vsub.s32 %v1642, %v1644
        %v1646 = vrot.slane %v1637, %v1645
        %v1648 = vunpack.c.l.s4 1966171168
        %v1649 = vunpack.c.0.s8 %v1648
        %v1650 = vlaneseq
        %v1651 = vshrl.u32 %v1650, 7
        %v1652 = vsub.s32 %v1649, %v1651
        %v1653 = vrot.slane %v1639, %v1652
        %v1654 = vcombine.high %v1646, %v1646
        %v1655 = vcombine.high %v1653, %v1653
        %v1657 = vunpack.c.l.s4 1966171168
        %v1658 = vunpack.c.0.s8 %v1657
        %v1659 = vlaneseq
        %v1660 = vshrl.u32 %v1659, 7
        %v1661 = vsub.s32 %v1658, %v1660
        %v1662 = vrot.slane %v1646, %v1661
        %v1664 = vunpack.c.l.s4 1966171168
        %v1665 = vunpack.c.0.s8 %v1664
        %v1666 = vlaneseq
        %v1667 = vshrl.u32 %v1666, 7
        %v1668 = vsub.s32 %v1665, %v1667
        %v1669 = vrot.slane %v1653, %v1668
        %v1671 = vunpack.c.l.s4 1966171168
        %v1672 = vunpack.c.0.s8 %v1671
        %v1673 = vlaneseq
        %v1674 = vshrl.u32 %v1673, 7
        %v1675 = vsub.s32 %v1672, %v1674
        %v1676 = vrot.slane %v1654, %v1675
        %v1678 = vunpack.c.l.s4 1966171168
        %v1679 = vunpack.c.0.s8 %v1678
        %v1680 = vlaneseq
        %v1681 = vshrl.u32 %v1680, 7
        %v1682 = vsub.s32 %v1679, %v1681
        %v1683 = vrot.slane %v1655, %v1682
        %v1684 = vcombine.high %v1662, %v1662
        %v1685 = vcombine.high %v1669, %v1669
        %v1686 = vcombine.high %v1676, %v1676
        %v1687 = vcombine.high %v1683, %v1683
        %1696 = vst [vmem:[%s344 + $0x4] sm:$0x1] %v1662
        %1697 = vst [vmem:[%s344 + $0xc] sm:$0x1] %v1676
        %1698 = vst [vmem:[%s344 + $0x14] sm:$0x1] %v1684
        %1699 = vst [vmem:[%s344 + $0x1c] sm:$0x1] %v1686
        %1700 = vst [vmem:[%s344 + $0x24] sm:$0x1] %v1669
        %1701 = vst [vmem:[%s344 + $0x2c] sm:$0x1] %v1683
        %1702 = vst [vmem:[%s344 + $0x34] sm:$0x1] %v1685
        %1703 = vst [vmem:[%s344 + $0x3c] sm:$0x1] %v1687
        %v1704 = vpack.c.bf16 %v1637, %v1637
        %1705 = vmatprep.subr.bf16.mxu0 %v757
        %1706 = vmatpush1.bf16.msra.mxu0 %v756
        %1707 = vmatprep.subr.bf16.mxu0 %v761
        %1708 = vmatpush1.bf16.msra.mxu0 %v760
        %1709 = vmatprep.subr.bf16.mxu0 %v765
        %1710 = vmatpush1.bf16.msra.mxu0 %v764
        %1711 = vmatprep.subr.bf16.mxu0 %v769
        %1712 = vmatpush1.bf16.msra.mxu0 %v768
        %1713 = vmatprep.subr.bf16.mxu0 %v773
        %1714 = vmatpush1.bf16.msra.mxu0 %v772
        %1715 = vmatprep.subr.bf16.mxu0 %v777
        %1716 = vmatpush1.bf16.msra.mxu0 %v776
        %1717 = vmatprep.subr.bf16.mxu0 %v781
        %1718 = vmatpush1.bf16.msra.mxu0 %v780
        %1719 = vmatprep.subr.bf16.mxu0 %v785
        %1720 = vmatpush1.bf16.msra.mxu0 %v784
        %1721 = vmatprep.subr.bf16.mxu0 0
        %1722 = vmatpush1.bf16.msra.mxu0 0
        %1723 = vmatprep.subr.bf16.mxu0 0
        %1724 = vmatpush1.bf16.msra.mxu0 0
        %1725 = vmatprep.subr.bf16.mxu0 0
        %1726 = vmatpush1.bf16.msra.mxu0 0
        %1727 = vmatprep.subr.bf16.mxu0 0
        %1728 = vmatpush1.bf16.msra.mxu0 0
        %1729 = vmatprep.subr.bf16.mxu0 0
        %1730 = vmatpush1.bf16.msra.mxu0 0
        %1731 = vmatprep.subr.bf16.mxu0 0
        %1732 = vmatpush1.bf16.msra.mxu0 0
        %1733 = vmatprep.subr.bf16.mxu0 0
        %1734 = vmatpush1.bf16.msra.mxu0 0
        %1735 = vmatprep.subr.bf16.mxu0 0
        %1736 = vmatpush1.bf16.msra.mxu0 0
        %1737 = vmatprep.mubr.bf16.mxu0 0
        %1738 = vmatmul.mubr.bf16.gmra.mrb[0].mxu0 %v1704
        %v1739 = vpop.f32.mrb[0].mxu0
        %v1740 = vadd.f32 0.0, %v1739
        %v1741 = vpop.f32.mrb[0].mxu0
        %v1742 = vadd.f32 0.0, %v1741
        %v1743 = vpop.f32.mrb[0].mxu0
        %v1744 = vpop.f32.mrb[0].mxu0
        %1745 = vdwg.mxu0
        %1746 = vmatprep.subr.bf16.mxu0 %v759
        %1747 = vmatpush1.bf16.msra.mxu0 %v758
        %1748 = vmatprep.subr.bf16.mxu0 %v763
        %1749 = vmatpush1.bf16.msra.mxu0 %v762
        %1750 = vmatprep.subr.bf16.mxu0 %v767
        %1751 = vmatpush1.bf16.msra.mxu0 %v766
        %1752 = vmatprep.subr.bf16.mxu0 %v771
        %1753 = vmatpush1.bf16.msra.mxu0 %v770
        %1754 = vmatprep.subr.bf16.mxu0 %v775
        %1755 = vmatpush1.bf16.msra.mxu0 %v774
        %1756 = vmatprep.subr.bf16.mxu0 %v779
        %1757 = vmatpush1.bf16.msra.mxu0 %v778
        %1758 = vmatprep.subr.bf16.mxu0 %v783
        %1759 = vmatpush1.bf16.msra.mxu0 %v782
        %1760 = vmatprep.subr.bf16.mxu0 %v787
        %1761 = vmatpush1.bf16.msra.mxu0 %v786
        %1762 = vmatprep.subr.bf16.mxu0 0
        %1763 = vmatpush1.bf16.msra.mxu0 0
        %1764 = vmatprep.subr.bf16.mxu0 0
        %1765 = vmatpush1.bf16.msra.mxu0 0
        %1766 = vmatprep.subr.bf16.mxu0 0
        %1767 = vmatpush1.bf16.msra.mxu0 0
        %1768 = vmatprep.subr.bf16.mxu0 0
        %1769 = vmatpush1.bf16.msra.mxu0 0
        %1770 = vmatprep.subr.bf16.mxu0 0
        %1771 = vmatpush1.bf16.msra.mxu0 0
        %1772 = vmatprep.subr.bf16.mxu0 0
        %1773 = vmatpush1.bf16.msra.mxu0 0
        %1774 = vmatprep.subr.bf16.mxu0 0
        %1775 = vmatpush1.bf16.msra.mxu0 0
        %1776 = vmatprep.subr.bf16.mxu0 0
        %1777 = vmatpush1.bf16.msra.mxu0 0
        %1778 = vmatprep.mubr.bf16.mxu0 0
        %1779 = vmatmul.mubr.bf16.gmra.mrb[0].mxu0 %v1704
        %v1780 = vpop.f32.mrb[0].mxu0
        %v1781 = vadd.f32 0.0, %v1780
        %v1782 = vpop.f32.mrb[0].mxu0
        %v1783 = vadd.f32 0.0, %v1782
        %v1784 = vpop.f32.mrb[0].mxu0
        %v1785 = vpop.f32.mrb[0].mxu0
        %1786 = vdwg.mxu0
        %v1787 = vadd.f32 %v538, %v1740
        %v1788 = vadd.f32 %v540, %v1742
        %v1789 = vadd.f32 %v611, %v1781
        %v1790 = vadd.f32 %v613, %v1783
        %v1791 = vxor.u32 %v1787, 2147483648
        %v1792 = vmul.f32 %v1791, 1.442695
        %v1793 = vpow.pop %v1792
        %v1794 = vadd.f32 %v1793, 1.0
        %v1795 = vrcp.pop %v1794
        %v1796 = vmul.f32 1.0, %v1795
        %v1797 = vxor.u32 %v1788, 2147483648
        %v1798 = vmul.f32 %v1797, 1.442695
        %v1799 = vpow.pop %v1798
        %v1800 = vadd.f32 %v1799, 1.0
        %v1801 = vrcp.pop %v1800
        %v1802 = vmul.f32 1.0, %v1801
        %v1803 = vtanh.pop %v1789
        %v1804 = vxor.u32 %v1790, 2147483648
        %v1805 = vmul.f32 %v1804, 1.442695
        %v1806 = vpow.pop %v1805
        %v1807 = vadd.f32 %v1806, 1.0
        %v1808 = vrcp.pop %v1807
        %v1809 = vmul.f32 1.0, %v1808
        %v1810 = vmul.f32 %v1802, %v1635
        %v1811 = vmul.f32 %v1796, %v1803
        %v1812 = vadd.f32 %v1810, %v1811
        %v1813 = vtanh.pop %v1812
        %v1814 = vmul.f32 %v1809, %v1813
        %v1816 = vcombine.high %v1814, %v1814
        %v1818 = vunpack.c.l.s4 1966171168
        %v1819 = vunpack.c.0.s8 %v1818
        %v1820 = vlaneseq
        %v1821 = vshrl.u32 %v1820, 7
        %v1822 = vsub.s32 %v1819, %v1821
        %v1823 = vrot.slane %v1814, %v1822
        %v1825 = vunpack.c.l.s4 1966171168
        %v1826 = vunpack.c.0.s8 %v1825
        %v1827 = vlaneseq
        %v1828 = vshrl.u32 %v1827, 7
        %v1829 = vsub.s32 %v1826, %v1828
        %v1830 = vrot.slane %v1816, %v1829
        %v1831 = vcombine.high %v1823, %v1823
        %v1832 = vcombine.high %v1830, %v1830
        %v1834 = vunpack.c.l.s4 1966171168
        %v1835 = vunpack.c.0.s8 %v1834
        %v1836 = vlaneseq
        %v1837 = vshrl.u32 %v1836, 7
        %v1838 = vsub.s32 %v1835, %v1837
        %v1839 = vrot.slane %v1823, %v1838
        %v1841 = vunpack.c.l.s4 1966171168
        %v1842 = vunpack.c.0.s8 %v1841
        %v1843 = vlaneseq
        %v1844 = vshrl.u32 %v1843, 7
        %v1845 = vsub.s32 %v1842, %v1844
        %v1846 = vrot.slane %v1830, %v1845
        %v1848 = vunpack.c.l.s4 1966171168
        %v1849 = vunpack.c.0.s8 %v1848
        %v1850 = vlaneseq
        %v1851 = vshrl.u32 %v1850, 7
        %v1852 = vsub.s32 %v1849, %v1851
        %v1853 = vrot.slane %v1831, %v1852
        %v1855 = vunpack.c.l.s4 1966171168
        %v1856 = vunpack.c.0.s8 %v1855
        %v1857 = vlaneseq
        %v1858 = vshrl.u32 %v1857, 7
        %v1859 = vsub.s32 %v1856, %v1858
        %v1860 = vrot.slane %v1832, %v1859
        %v1861 = vcombine.high %v1839, %v1839
        %v1862 = vcombine.high %v1846, %v1846
        %v1863 = vcombine.high %v1853, %v1853
        %v1864 = vcombine.high %v1860, %v1860
        %1873 = vst [vmem:[%s344 + $0x5] sm:$0x1] %v1839
        %1874 = vst [vmem:[%s344 + $0xd] sm:$0x1] %v1853
        %1875 = vst [vmem:[%s344 + $0x15] sm:$0x1] %v1861
        %1876 = vst [vmem:[%s344 + $0x1d] sm:$0x1] %v1863
        %1877 = vst [vmem:[%s344 + $0x25] sm:$0x1] %v1846
        %1878 = vst [vmem:[%s344 + $0x2d] sm:$0x1] %v1860
        %1879 = vst [vmem:[%s344 + $0x35] sm:$0x1] %v1862
        %1880 = vst [vmem:[%s344 + $0x3d] sm:$0x1] %v1864
        %v1881 = vpack.c.bf16 %v1814, %v1814
        %1882 = vmatprep.subr.bf16.mxu0 %v757
        %1883 = vmatpush1.bf16.msra.mxu0 %v756
        %1884 = vmatprep.subr.bf16.mxu0 %v761
        %1885 = vmatpush1.bf16.msra.mxu0 %v760
        %1886 = vmatprep.subr.bf16.mxu0 %v765
        %1887 = vmatpush1.bf16.msra.mxu0 %v764
        %1888 = vmatprep.subr.bf16.mxu0 %v769
        %1889 = vmatpush1.bf16.msra.mxu0 %v768
        %1890 = vmatprep.subr.bf16.mxu0 %v773
        %1891 = vmatpush1.bf16.msra.mxu0 %v772
        %1892 = vmatprep.subr.bf16.mxu0 %v777
        %1893 = vmatpush1.bf16.msra.mxu0 %v776
        %1894 = vmatprep.subr.bf16.mxu0 %v781
        %1895 = vmatpush1.bf16.msra.mxu0 %v780
        %1896 = vmatprep.subr.bf16.mxu0 %v785
        %1897 = vmatpush1.bf16.msra.mxu0 %v784
        %1898 = vmatprep.subr.bf16.mxu0 0
        %1899 = vmatpush1.bf16.msra.mxu0 0
        %1900 = vmatprep.subr.bf16.mxu0 0
        %1901 = vmatpush1.bf16.msra.mxu0 0
        %1902 = vmatprep.subr.bf16.mxu0 0
        %1903 = vmatpush1.bf16.msra.mxu0 0
        %1904 = vmatprep.subr.bf16.mxu0 0
        %1905 = vmatpush1.bf16.msra.mxu0 0
        %1906 = vmatprep.subr.bf16.mxu0 0
        %1907 = vmatpush1.bf16.msra.mxu0 0
        %1908 = vmatprep.subr.bf16.mxu0 0
        %1909 = vmatpush1.bf16.msra.mxu0 0
        %1910 = vmatprep.subr.bf16.mxu0 0
        %1911 = vmatpush1.bf16.msra.mxu0 0
        %1912 = vmatprep.subr.bf16.mxu0 0
        %1913 = vmatpush1.bf16.msra.mxu0 0
        %1914 = vmatprep.mubr.bf16.mxu0 0
        %1915 = vmatmul.mubr.bf16.gmra.mrb[0].mxu0 %v1881
        %v1916 = vpop.f32.mrb[0].mxu0
        %v1917 = vadd.f32 0.0, %v1916
        %v1918 = vpop.f32.mrb[0].mxu0
        %v1919 = vadd.f32 0.0, %v1918
        %v1920 = vpop.f32.mrb[0].mxu0
        %v1921 = vpop.f32.mrb[0].mxu0
        %1922 = vdwg.mxu0
        %1923 = vmatprep.subr.bf16.mxu0 %v759
        %1924 = vmatpush1.bf16.msra.mxu0 %v758
        %1925 = vmatprep.subr.bf16.mxu0 %v763
        %1926 = vmatpush1.bf16.msra.mxu0 %v762
        %1927 = vmatprep.subr.bf16.mxu0 %v767
        %1928 = vmatpush1.bf16.msra.mxu0 %v766
        %1929 = vmatprep.subr.bf16.mxu0 %v771
        %1930 = vmatpush1.bf16.msra.mxu0 %v770
        %1931 = vmatprep.subr.bf16.mxu0 %v775
        %1932 = vmatpush1.bf16.msra.mxu0 %v774
        %1933 = vmatprep.subr.bf16.mxu0 %v779
        %1934 = vmatpush1.bf16.msra.mxu0 %v778
        %1935 = vmatprep.subr.bf16.mxu0 %v783
        %1936 = vmatpush1.bf16.msra.mxu0 %v782
        %1937 = vmatprep.subr.bf16.mxu0 %v787
        %1938 = vmatpush1.bf16.msra.mxu0 %v786
        %1939 = vmatprep.subr.bf16.mxu0 0
        %1940 = vmatpush1.bf16.msra.mxu0 0
        %1941 = vmatprep.subr.bf16.mxu0 0
        %1942 = vmatpush1.bf16.msra.mxu0 0
        %1943 = vmatprep.subr.bf16.mxu0 0
        %1944 = vmatpush1.bf16.msra.mxu0 0
        %1945 = vmatprep.subr.bf16.mxu0 0
        %1946 = vmatpush1.bf16.msra.mxu0 0
        %1947 = vmatprep.subr.bf16.mxu0 0
        %1948 = vmatpush1.bf16.msra.mxu0 0
        %1949 = vmatprep.subr.bf16.mxu0 0
        %1950 = vmatpush1.bf16.msra.mxu0 0
        %1951 = vmatprep.subr.bf16.mxu0 0
        %1952 = vmatpush1.bf16.msra.mxu0 0
        %1953 = vmatprep.subr.bf16.mxu0 0
        %1954 = vmatpush1.bf16.msra.mxu0 0
        %1955 = vmatprep.mubr.bf16.mxu0 0
        %1956 = vmatmul.mubr.bf16.gmra.mrb[0].mxu0 %v1881
        %v1957 = vpop.f32.mrb[0].mxu0
        %v1958 = vadd.f32 0.0, %v1957
        %v1959 = vpop.f32.mrb[0].mxu0
        %v1960 = vadd.f32 0.0, %v1959
        %v1961 = vpop.f32.mrb[0].mxu0
        %v1962 = vpop.f32.mrb[0].mxu0
        %1963 = vdwg.mxu0
        %v1964 = vadd.f32 %v544, %v1917
        %v1965 = vadd.f32 %v546, %v1919
        %v1966 = vadd.f32 %v617, %v1958
        %v1967 = vadd.f32 %v619, %v1960
        %v1968 = vxor.u32 %v1964, 2147483648
        %v1969 = vmul.f32 %v1968, 1.442695
        %v1970 = vpow.pop %v1969
        %v1971 = vadd.f32 %v1970, 1.0
        %v1972 = vrcp.pop %v1971
        %v1973 = vmul.f32 1.0, %v1972
        %v1974 = vxor.u32 %v1965, 2147483648
        %v1975 = vmul.f32 %v1974, 1.442695
        %v1976 = vpow.pop %v1975
        %v1977 = vadd.f32 %v1976, 1.0
        %v1978 = vrcp.pop %v1977
        %v1979 = vmul.f32 1.0, %v1978
        %v1980 = vtanh.pop %v1966
        %v1981 = vxor.u32 %v1967, 2147483648
        %v1982 = vmul.f32 %v1981, 1.442695
        %v1983 = vpow.pop %v1982
        %v1984 = vadd.f32 %v1983, 1.0
        %v1985 = vrcp.pop %v1984
        %v1986 = vmul.f32 1.0, %v1985
        %v1987 = vmul.f32 %v1979, %v1812
        %v1988 = vmul.f32 %v1973, %v1980
        %v1989 = vadd.f32 %v1987, %v1988
        %v1990 = vtanh.pop %v1989
        %v1991 = vmul.f32 %v1986, %v1990
        %v1993 = vcombine.high %v1991, %v1991
        %v1995 = vunpack.c.l.s4 1966171168
        %v1996 = vunpack.c.0.s8 %v1995
        %v1997 = vlaneseq
        %v1998 = vshrl.u32 %v1997, 7
        %v1999 = vsub.s32 %v1996, %v1998
        %v2000 = vrot.slane %v1991, %v1999
        %v2002 = vunpack.c.l.s4 1966171168
        %v2003 = vunpack.c.0.s8 %v2002
        %v2004 = vlaneseq
        %v2005 = vshrl.u32 %v2004, 7
        %v2006 = vsub.s32 %v2003, %v2005
        %v2007 = vrot.slane %v1993, %v2006
        %v2008 = vcombine.high %v2000, %v2000
        %v2009 = vcombine.high %v2007, %v2007
        %v2011 = vunpack.c.l.s4 1966171168
        %v2012 = vunpack.c.0.s8 %v2011
        %v2013 = vlaneseq
        %v2014 = vshrl.u32 %v2013, 7
        %v2015 = vsub.s32 %v2012, %v2014
        %v2016 = vrot.slane %v2000, %v2015
        %v2018 = vunpack.c.l.s4 1966171168
        %v2019 = vunpack.c.0.s8 %v2018
        %v2020 = vlaneseq
        %v2021 = vshrl.u32 %v2020, 7
        %v2022 = vsub.s32 %v2019, %v2021
        %v2023 = vrot.slane %v2007, %v2022
        %v2025 = vunpack.c.l.s4 1966171168
        %v2026 = vunpack.c.0.s8 %v2025
        %v2027 = vlaneseq
        %v2028 = vshrl.u32 %v2027, 7
        %v2029 = vsub.s32 %v2026, %v2028
        %v2030 = vrot.slane %v2008, %v2029
        %v2032 = vunpack.c.l.s4 1966171168
        %v2033 = vunpack.c.0.s8 %v2032
        %v2034 = vlaneseq
        %v2035 = vshrl.u32 %v2034, 7
        %v2036 = vsub.s32 %v2033, %v2035
        %v2037 = vrot.slane %v2009, %v2036
        %v2038 = vcombine.high %v2016, %v2016
        %v2039 = vcombine.high %v2023, %v2023
        %v2040 = vcombine.high %v2030, %v2030
        %v2041 = vcombine.high %v2037, %v2037
        %2050 = vst [vmem:[%s344 + $0x6] sm:$0x1] %v2016
        %2051 = vst [vmem:[%s344 + $0xe] sm:$0x1] %v2030
        %2052 = vst [vmem:[%s344 + $0x16] sm:$0x1] %v2038
        %2053 = vst [vmem:[%s344 + $0x1e] sm:$0x1] %v2040
        %2054 = vst [vmem:[%s344 + $0x26] sm:$0x1] %v2023
        %2055 = vst [vmem:[%s344 + $0x2e] sm:$0x1] %v2037
        %2056 = vst [vmem:[%s344 + $0x36] sm:$0x1] %v2039
        %2057 = vst [vmem:[%s344 + $0x3e] sm:$0x1] %v2041
        %v2058 = vpack.c.bf16 %v1991, %v1991
        %2059 = vmatprep.subr.bf16.mxu0 %v757
        %2060 = vmatpush1.bf16.msra.mxu0 %v756
        %2061 = vmatprep.subr.bf16.mxu0 %v761
        %2062 = vmatpush1.bf16.msra.mxu0 %v760
        %2063 = vmatprep.subr.bf16.mxu0 %v765
        %2064 = vmatpush1.bf16.msra.mxu0 %v764
        %2065 = vmatprep.subr.bf16.mxu0 %v769
        %2066 = vmatpush1.bf16.msra.mxu0 %v768
        %2067 = vmatprep.subr.bf16.mxu0 %v773
        %2068 = vmatpush1.bf16.msra.mxu0 %v772
        %2069 = vmatprep.subr.bf16.mxu0 %v777
        %2070 = vmatpush1.bf16.msra.mxu0 %v776
        %2071 = vmatprep.subr.bf16.mxu0 %v781
        %2072 = vmatpush1.bf16.msra.mxu0 %v780
        %2073 = vmatprep.subr.bf16.mxu0 %v785
        %2074 = vmatpush1.bf16.msra.mxu0 %v784
        %2075 = vmatprep.subr.bf16.mxu0 0
        %2076 = vmatpush1.bf16.msra.mxu0 0
        %2077 = vmatprep.subr.bf16.mxu0 0
        %2078 = vmatpush1.bf16.msra.mxu0 0
        %2079 = vmatprep.subr.bf16.mxu0 0
        %2080 = vmatpush1.bf16.msra.mxu0 0
        %2081 = vmatprep.subr.bf16.mxu0 0
        %2082 = vmatpush1.bf16.msra.mxu0 0
        %2083 = vmatprep.subr.bf16.mxu0 0
        %2084 = vmatpush1.bf16.msra.mxu0 0
        %2085 = vmatprep.subr.bf16.mxu0 0
        %2086 = vmatpush1.bf16.msra.mxu0 0
        %2087 = vmatprep.subr.bf16.mxu0 0
        %2088 = vmatpush1.bf16.msra.mxu0 0
        %2089 = vmatprep.subr.bf16.mxu0 0
        %2090 = vmatpush1.bf16.msra.mxu0 0
        %2091 = vmatprep.mubr.bf16.mxu0 0
        %2092 = vmatmul.mubr.bf16.gmra.mrb[0].mxu0 %v2058
        %v2093 = vpop.f32.mrb[0].mxu0
        %v2094 = vadd.f32 0.0, %v2093
        %v2095 = vpop.f32.mrb[0].mxu0
        %v2096 = vadd.f32 0.0, %v2095
        %v2097 = vpop.f32.mrb[0].mxu0
        %v2098 = vpop.f32.mrb[0].mxu0
        %2099 = vdwg.mxu0
        %2100 = vmatprep.subr.bf16.mxu0 %v759
        %2101 = vmatpush1.bf16.msra.mxu0 %v758
        %2102 = vmatprep.subr.bf16.mxu0 %v763
        %2103 = vmatpush1.bf16.msra.mxu0 %v762
        %2104 = vmatprep.subr.bf16.mxu0 %v767
        %2105 = vmatpush1.bf16.msra.mxu0 %v766
        %2106 = vmatprep.subr.bf16.mxu0 %v771
        %2107 = vmatpush1.bf16.msra.mxu0 %v770
        %2108 = vmatprep.subr.bf16.mxu0 %v775
        %2109 = vmatpush1.bf16.msra.mxu0 %v774
        %2110 = vmatprep.subr.bf16.mxu0 %v779
        %2111 = vmatpush1.bf16.msra.mxu0 %v778
        %2112 = vmatprep.subr.bf16.mxu0 %v783
        %2113 = vmatpush1.bf16.msra.mxu0 %v782
        %2114 = vmatprep.subr.bf16.mxu0 %v787
        %2115 = vmatpush1.bf16.msra.mxu0 %v786
        %2116 = vmatprep.subr.bf16.mxu0 0
        %2117 = vmatpush1.bf16.msra.mxu0 0
        %2118 = vmatprep.subr.bf16.mxu0 0
        %2119 = vmatpush1.bf16.msra.mxu0 0
        %2120 = vmatprep.subr.bf16.mxu0 0
        %2121 = vmatpush1.bf16.msra.mxu0 0
        %2122 = vmatprep.subr.bf16.mxu0 0
        %2123 = vmatpush1.bf16.msra.mxu0 0
        %2124 = vmatprep.subr.bf16.mxu0 0
        %2125 = vmatpush1.bf16.msra.mxu0 0
        %2126 = vmatprep.subr.bf16.mxu0 0
        %2127 = vmatpush1.bf16.msra.mxu0 0
        %2128 = vmatprep.subr.bf16.mxu0 0
        %2129 = vmatpush1.bf16.msra.mxu0 0
        %2130 = vmatprep.subr.bf16.mxu0 0
        %2131 = vmatpush1.bf16.msra.mxu0 0
        %2132 = vmatprep.mubr.bf16.mxu0 0
        %2133 = vmatmul.mubr.bf16.gmra.mrb[0].mxu0 %v2058
        %v2134 = vpop.f32.mrb[0].mxu0
        %v2135 = vadd.f32 0.0, %v2134
        %v2136 = vpop.f32.mrb[0].mxu0
        %v2137 = vadd.f32 0.0, %v2136
        %v2138 = vpop.f32.mrb[0].mxu0
        %v2139 = vpop.f32.mrb[0].mxu0
        %2140 = vdwg.mxu0
        %v2141 = vadd.f32 %v548, %v2094
        %v2142 = vadd.f32 %v550, %v2096
        %v2143 = vadd.f32 %v621, %v2135
        %v2144 = vadd.f32 %v623, %v2137
        %v2145 = vxor.u32 %v2141, 2147483648
        %v2146 = vmul.f32 %v2145, 1.442695
        %v2147 = vpow.pop %v2146
        %v2148 = vadd.f32 %v2147, 1.0
        %v2149 = vrcp.pop %v2148
        %v2150 = vmul.f32 1.0, %v2149
        %v2151 = vxor.u32 %v2142, 2147483648
        %v2152 = vmul.f32 %v2151, 1.442695
        %v2153 = vpow.pop %v2152
        %v2154 = vadd.f32 %v2153, 1.0
        %v2155 = vrcp.pop %v2154
        %v2156 = vmul.f32 1.0, %v2155
        %v2157 = vtanh.pop %v2143
        %v2158 = vxor.u32 %v2144, 2147483648
        %v2159 = vmul.f32 %v2158, 1.442695
        %v2160 = vpow.pop %v2159
        %v2161 = vadd.f32 %v2160, 1.0
        %v2162 = vrcp.pop %v2161
        %v2163 = vmul.f32 1.0, %v2162
        %v2164 = vmul.f32 %v2156, %v1989
        %v2165 = vmul.f32 %v2150, %v2157
        %v2166 = vadd.f32 %v2164, %v2165
        %v2167 = vtanh.pop %v2166
        %v2168 = vmul.f32 %v2163, %v2167
        %v2170 = vcombine.high %v2168, %v2168
        %v2172 = vunpack.c.l.s4 1966171168
        %v2173 = vunpack.c.0.s8 %v2172
        %v2174 = vlaneseq
        %v2175 = vshrl.u32 %v2174, 7
        %v2176 = vsub.s32 %v2173, %v2175
        %v2177 = vrot.slane %v2168, %v2176
        %v2179 = vunpack.c.l.s4 1966171168
        %v2180 = vunpack.c.0.s8 %v2179
        %v2181 = vlaneseq
        %v2182 = vshrl.u32 %v2181, 7
        %v2183 = vsub.s32 %v2180, %v2182
        %v2184 = vrot.slane %v2170, %v2183
        %v2185 = vcombine.high %v2177, %v2177
        %v2186 = vcombine.high %v2184, %v2184
        %v2188 = vunpack.c.l.s4 1966171168
        %v2189 = vunpack.c.0.s8 %v2188
        %v2190 = vlaneseq
        %v2191 = vshrl.u32 %v2190, 7
        %v2192 = vsub.s32 %v2189, %v2191
        %v2193 = vrot.slane %v2177, %v2192
        %v2195 = vunpack.c.l.s4 1966171168
        %v2196 = vunpack.c.0.s8 %v2195
        %v2197 = vlaneseq
        %v2198 = vshrl.u32 %v2197, 7
        %v2199 = vsub.s32 %v2196, %v2198
        %v2200 = vrot.slane %v2184, %v2199
        %v2202 = vunpack.c.l.s4 1966171168
        %v2203 = vunpack.c.0.s8 %v2202
        %v2204 = vlaneseq
        %v2205 = vshrl.u32 %v2204, 7
        %v2206 = vsub.s32 %v2203, %v2205
        %v2207 = vrot.slane %v2185, %v2206
        %v2209 = vunpack.c.l.s4 1966171168
        %v2210 = vunpack.c.0.s8 %v2209
        %v2211 = vlaneseq
        %v2212 = vshrl.u32 %v2211, 7
        %v2213 = vsub.s32 %v2210, %v2212
        %v2214 = vrot.slane %v2186, %v2213
        %v2215 = vcombine.high %v2193, %v2193
        %v2216 = vcombine.high %v2200, %v2200
        %v2217 = vcombine.high %v2207, %v2207
        %v2218 = vcombine.high %v2214, %v2214
        %2227 = vst [vmem:[%s344 + $0x7] sm:$0x1] %v2193
        %2228 = vst [vmem:[%s344 + $0xf] sm:$0x1] %v2207
        %2229 = vst [vmem:[%s344 + $0x17] sm:$0x1] %v2215
        %2230 = vst [vmem:[%s344 + $0x1f] sm:$0x1] %v2217
        %2231 = vst [vmem:[%s344 + $0x27] sm:$0x1] %v2200
        %2232 = vst [vmem:[%s344 + $0x2f] sm:$0x1] %v2214
        %2233 = vst [vmem:[%s344 + $0x37] sm:$0x1] %v2216
        %2234 = vst [vmem:[%s344 + $0x3f] sm:$0x1] %v2218
        %2235 = vst [vmem:[#allocation2] sm:$0xff] %v2168
        %2236 = vst [vmem:[#allocation3] sm:$0xff] %v2166
        %p2237 = scmp.eq.s32.totalorder %s25, 1
        // Predicated region
        $region49: #{encoder_forward.1} parent=43 // pred_check
          %p2238 = pneg %p2237
        $region50: #{encoder_forward.1} parent=43 // pred_check_branch
          %2240 = sbr.rel (%p2238) target = $region52
        $region51: #{encoder_forward.1} parent=43 // pred_region
          %2241 = vst [vmem:[%s378] sm:$0xff] %v2168
          %2242 = vst [vmem:[%s382] sm:$0xff] %v2166
        $region52: #{encoder_forward.1} parent=43 // pred_fallthru
          _
        %s2243 = sand.u32 %s185, 1
        %s2244 = sand.u32 %s185, 1
        %s2245 = smul.addr %s2244, 64
        %s2246 = scalar_lea.vmem [#allocation4], %s2245
        %p2247 = scmp.lt.s32.totalorder %s24, 0
        %s2248 = scalar_select %p2247, %s24, 0
        %s2249 = smul.addr %s2248, 8
        %s2250 = scalar_lea.vmem %s7, %s2249
        %p2251 = scmp.lt.s32.totalorder %s24, 0
        %s2252 = scalar_select %p2251, %s24, 0
        %s2253 = smul.addr %s2252, 8
        %s2254 = scalar_lea.vmem %s8, %s2253
        // Predicated region
        $region53: #{encoder_forward.1} parent=43 // pred_check
          %p2255 = pneg %p195
        $region54: #{encoder_forward.1} parent=43 // pred_check_branch
          %2257 = sbr.rel (%p2255) target = $region56
        $region55: #{encoder_forward.1} parent=43 // pred_region
          %s2258 = smul.u32 8, %s24
          %s2259 = smul.addr %s2258, 2
          %s2260 = sadd.s32 %s25, %s2259
          %s2261 = smul.addr %s2260, 8
          %s2262 = scalar_lea.vmem %s6, %s2261
          // Predicated region
          $region57: #{encoder_forward.1} parent=55 // pred_check
            _
          $region58: #{encoder_forward.1} parent=55 // pred_check_branch
            %2264 = sbr.rel (0) target = $region60
          $region59: #{encoder_forward.1} parent=55 // pred_region
            // Predicated region
            $region61: #{encoder_forward.1} parent=59 // pred_check
              _
            $region62: #{encoder_forward.1} parent=59 // pred_check_branch
              %2266 = sbr.rel (0) target = $region64
            $region63: #{encoder_forward.1} parent=59 // pred_region
              // Predicated region
              $region76: #{encoder_forward.1} parent=63 // pred_check
                _
              $region77: #{encoder_forward.1} parent=63 // pred_check_branch
                %2295 = sbr.rel (0) target = $region79
              $region78: #{encoder_forward.1} parent=63 // pred_region
                loop: start=0, step=1, limit=1
                $region80: #{encoder_forward.1} parent=78 // loop_pre_header
                  _
                $region81: #{encoder_forward.1} parent=78 // loop_header
                  %s2297 = sphi 0, %s2301
                  %p2298 = scmp.ge.s32.totalorder %s2297, 1
                  %s2302 = sphi %s2246, %s2246
                  %s2303 = sphi %s2262, %s2262
                $region82: #{encoder_forward.1} parent=78 // loop_header_branch
                  %2300 = sbr.rel (%p2298) target = $region86
                $region83: #{encoder_forward.1} parent=78 // loop_body
                  %v2304 = vld [vmem:[%s2302] sm:$0xff]
                  %2305 = vst [vmem:[%s2303] sm:$0xff] %v2304
                  %v2306 = vld [vmem:[%s2302 + $0x8] sm:$0xff]
                  %2307 = vst [vmem:[%s2303 + $0x10] sm:$0xff] %v2306
                  %v2308 = vld [vmem:[%s2302 + $0x10] sm:$0xff]
                  %2309 = vst [vmem:[%s2303 + $0x20] sm:$0xff] %v2308
                  %v2310 = vld [vmem:[%s2302 + $0x18] sm:$0xff]
                  %2311 = vst [vmem:[%s2303 + $0x30] sm:$0xff] %v2310
                  %v2312 = vld [vmem:[%s2302 + $0x20] sm:$0xff]
                  %2313 = vst [vmem:[%s2303 + $0x40] sm:$0xff] %v2312
                  %v2314 = vld [vmem:[%s2302 + $0x28] sm:$0xff]
                  %2315 = vst [vmem:[%s2303 + $0x50] sm:$0xff] %v2314
                  %v2316 = vld [vmem:[%s2302 + $0x30] sm:$0xff]
                  %2317 = vst [vmem:[%s2303 + $0x60] sm:$0xff] %v2316
                  %v2318 = vld [vmem:[%s2302 + $0x38] sm:$0xff]
                  %2319 = vst [vmem:[%s2303 + $0x70] sm:$0xff] %v2318
                $region84: #{encoder_forward.1} parent=78 // loop_footer
                  %s2301 = sadd.s32 1, %s2297
                $region85: #{encoder_forward.1} parent=78 // loop_footer_branch
                  %2296 = sbr.rel target = $region81
                $region86: #{encoder_forward.1} parent=78 // loop_exit
                  _
              $region79: #{encoder_forward.1} parent=63 // pred_fallthru
                _
              // Predicated region
              $region87: #{encoder_forward.1} parent=63 // pred_check
                _
              $region88: #{encoder_forward.1} parent=63 // pred_check_branch
                %2321 = sbr.rel target = $region90
              $region89: #{encoder_forward.1} parent=63 // pred_region
                _
              $region90: #{encoder_forward.1} parent=63 // pred_fallthru
                _
            $region64: #{encoder_forward.1} parent=59 // pred_fallthru
              _
            // Predicated region
            $region65: #{encoder_forward.1} parent=59 // pred_check
              _
            $region66: #{encoder_forward.1} parent=59 // pred_check_branch
              %2268 = sbr.rel target = $region68
            $region67: #{encoder_forward.1} parent=59 // pred_region
              loop: start=0, step=1, limit=1
              $region69: #{encoder_forward.1} parent=67 // loop_pre_header
                _
              $region70: #{encoder_forward.1} parent=67 // loop_header
                %s2271 = sphi 0, %s2275
                %p2272 = scmp.ge.s32.totalorder %s2271, 1
                %s2276 = sphi %s2246, %s2246
                %s2277 = sphi %s2262, %s2262
              $region71: #{encoder_forward.1} parent=67 // loop_header_branch
                %2274 = sbr.rel (%p2272) target = $region75
              $region72: #{encoder_forward.1} parent=67 // loop_body
                %v2278 = vld [vmem:[%s2276] sm:$0xff]
                %2279 = vst [vmem:[%s2277] sm:$0xff] %v2278
                %v2280 = vld [vmem:[%s2276 + $0x8] sm:$0xff]
                %2281 = vst [vmem:[%s2277 + $0x10] sm:$0xff] %v2280
                %v2282 = vld [vmem:[%s2276 + $0x10] sm:$0xff]
                %2283 = vst [vmem:[%s2277 + $0x20] sm:$0xff] %v2282
                %v2284 = vld [vmem:[%s2276 + $0x18] sm:$0xff]
                %2285 = vst [vmem:[%s2277 + $0x30] sm:$0xff] %v2284
                %v2286 = vld [vmem:[%s2276 + $0x20] sm:$0xff]
                %2287 = vst [vmem:[%s2277 + $0x40] sm:$0xff] %v2286
                %v2288 = vld [vmem:[%s2276 + $0x28] sm:$0xff]
                %2289 = vst [vmem:[%s2277 + $0x50] sm:$0xff] %v2288
                %v2290 = vld [vmem:[%s2276 + $0x30] sm:$0xff]
                %2291 = vst [vmem:[%s2277 + $0x60] sm:$0xff] %v2290
                %v2292 = vld [vmem:[%s2276 + $0x38] sm:$0xff]
                %2293 = vst [vmem:[%s2277 + $0x70] sm:$0xff] %v2292
              $region73: #{encoder_forward.1} parent=67 // loop_footer
                %s2275 = sadd.s32 1, %s2271
              $region74: #{encoder_forward.1} parent=67 // loop_footer_branch
                %2270 = sbr.rel target = $region70
              $region75: #{encoder_forward.1} parent=67 // loop_exit
                _
            $region68: #{encoder_forward.1} parent=59 // pred_fallthru
              _
          $region60: #{encoder_forward.1} parent=55 // pred_fallthru
            _
          %2322 = vnop
        $region56: #{encoder_forward.1} parent=43 // pred_fallthru
          _
        // Predicated region
        $region91: #{encoder_forward.1} parent=43 // pred_check
          %p2323 = pneg %p221
        $region92: #{encoder_forward.1} parent=43 // pred_check_branch
          %2325 = sbr.rel (%p2323) target = $region94
        $region93: #{encoder_forward.1} parent=43 // pred_region
          _
        $region94: #{encoder_forward.1} parent=43 // pred_fallthru
          _
        // Predicated region
        $region95: #{encoder_forward.1} parent=43 // pred_check
          %p2326 = pneg %p247
        $region96: #{encoder_forward.1} parent=43 // pred_check_branch
          %2328 = sbr.rel (%p2326) target = $region98
        $region97: #{encoder_forward.1} parent=43 // pred_region
          _
        $region98: #{encoder_forward.1} parent=43 // pred_fallthru
          _
        // Predicated region
        $region99: #{encoder_forward.1} parent=43 // pred_check
          %p2329 = pneg %p221
        $region100: #{encoder_forward.1} parent=43 // pred_check_branch
          %2331 = sbr.rel (%p2329) target = $region102
        $region101: #{encoder_forward.1} parent=43 // pred_region
          %p2332 = scmp.lt.s32.totalorder %s24, 0
          %s2333 = scalar_select %p2332, %s24, 0
          %s2334 = smul.addr %s2333, 8
          %s2335 = scalar_lea.vmem %s7, %s2334
        $region102: #{encoder_forward.1} parent=43 // pred_fallthru
          _
        // Predicated region
        $region103: #{encoder_forward.1} parent=43 // pred_check
          %p2336 = pneg %p247
        $region104: #{encoder_forward.1} parent=43 // pred_check_branch
          %2338 = sbr.rel (%p2336) target = $region106
        $region105: #{encoder_forward.1} parent=43 // pred_region
          %p2339 = scmp.lt.s32.totalorder %s24, 0
          %s2340 = scalar_select %p2339, %s24, 0
          %s2341 = smul.addr %s2340, 8
          %s2342 = scalar_lea.vmem %s8, %s2341
        $region106: #{encoder_forward.1} parent=43 // pred_fallthru
          _
      $region44: #{encoder_forward.1} parent=5 // pred_fallthru
        _
      %p2343 = scmp.le.s32.totalorder 2, %s15
      // Predicated region
      $region107: #{encoder_forward.1} parent=5 // pred_check
        %p2344 = pneg %p2343
      $region108: #{encoder_forward.1} parent=5 // pred_check_branch
        %2346 = sbr.rel (%p2344) target = $region110
      $region109: #{encoder_forward.1} parent=5 // pred_region
        %s2347 = ssub.s32 %s15, 2
        // Predicated region
        $region111: #{encoder_forward.1} parent=109 // pred_check
          %p2348 = pneg %p201
        $region112: #{encoder_forward.1} parent=109 // pred_check_branch
          %2350 = sbr.rel (%p2348) target = $region114
        $region113: #{encoder_forward.1} parent=109 // pred_region
          %s2351 = sand.u32 %s186, 1
          %s2352 = sand.u32 %s186, 1
          %s2353 = smul.addr %s2352, 64
          %s2354 = scalar_lea.vmem [#allocation4], %s2353
        $region114: #{encoder_forward.1} parent=109 // pred_fallthru
          _
      $region110: #{encoder_forward.1} parent=5 // pred_fallthru
        _
    $region6: #{encoder_forward.1} parent=1 // loop_footer
      %s19 = sadd.s32 1, %s15
    $region7: #{encoder_forward.1} parent=1 // loop_footer_branch
      %14 = sbr.rel target = $region3
    $region8: #{encoder_forward.1} parent=1 // loop_exit
      _

</llo_original>
